<compile_context>
chip_gen: v7x
topology: tpu7x:2x2x1
jax: 0.10.0
libtpu: 0.0.40
codegen_flags: <defaults>
</compile_context>

<pallas_src>
import functools

import jax
import jax.numpy as jnp
from jax.experimental import pallas as pl
from jax.experimental.pallas import tpu as pltpu


def _targets_kernel(w_ref, phase_ref, mass_ref, o_ref):
    """One grid point = (core split c, particle block j).

    w_ref:     (8, K*H)     bf16  fused weights, bias folded into row 6, row 7 hits the 0 feature
    phase_ref: (tile_n, 8)  bf16  [x, y, z, vx, vy, vz, 1, 0] per particle
    mass_ref:  (1, tile_n)  bf16  masses as a lane-dense row
    o_ref:     (1, 1, K*H)  f32   partial mass-weighted observables for this split,
                                  resident across the particle ("arbitrary") axis.
    """
    j = pl.program_id(1)

    @pl.when(j == 0)
    def _():
        o_ref[...] = jnp.zeros_like(o_ref)

    # Single depth-8 bf16 matmul on the MXU, f32 accumulation (bias is weight row 6).
    z = jnp.dot(phase_ref[...], w_ref[...], preferred_element_type=jnp.float32)

    # tanh in bf16 (EUP); result stays bf16 for the reduce matmul.
    t = jnp.tanh(z.astype(jnp.bfloat16))            # (tile_n, K*H) bf16

    # Mass-weighted particle reduction as a bf16 MXU matmul with f32 accumulation:
    # (1, tile_n) @ (tile_n, K*H) -> (1, K*H)
    contrib = jnp.dot(mass_ref[...], t, preferred_element_type=jnp.float32)
    o_ref[0] = o_ref[0] + contrib


@functools.partial(jax.jit, static_argnames=("tile_n", "n_splits"))
def dynamical_model_forward(positions, velocities, masses, target_weights,
                            *, tile_n=1024, n_splits=1):
    """Evaluate all targets on the snapshot.  Returns a stacked (K, H) array.

    n_splits should equal the number of TensorCores per chip (1 on v5e/v6e, 2 on v7x).
    """
    n = positions.shape[0]
    k, f, h = target_weights.shape
    kh = k * h
    assert f == 8
    assert kh % 128 == 0
    assert tile_n % 128 == 0

    # Pad the particle range up to a multiple of tile_n * n_splits with zero-mass particles
    # so the resident accumulator stays exact for arbitrary N.
    chunk = tile_n * n_splits
    n_pad = (-n) % chunk
    if n_pad:
        positions = jnp.pad(positions, ((0, n_pad), (0, 0)))
        velocities = jnp.pad(velocities, ((0, n_pad), (0, 0)))
        masses_p = jnp.pad(masses, (0, n_pad))
    else:
        masses_p = masses
    n_total = n + n_pad
    blocks_per_split = n_total // chunk

    # Fused (8, K*H) bf16 weight: rows 0..5 act on phase space, row 6 is the bias (it hits the
    # constant-1 phase feature), row 7 hits the always-zero feature.
    w_all = jnp.transpose(target_weights.astype(jnp.float32), (1, 0, 2)).reshape(f, kh)
    w_bf = w_all.astype(jnp.bfloat16)                                  # (8, K*H)

    # (N, 8) bf16 phase array [x, y, z, vx, vy, vz, 1, 0].
    phase = jnp.concatenate(
        [positions.astype(jnp.float32), velocities.astype(jnp.float32),
         jnp.ones((n_total, 1), jnp.float32), jnp.zeros((n_total, 1), jnp.float32)],
        axis=1).astype(jnp.bfloat16)                                   # (n_total, 8)

    mass_row = masses_p.astype(jnp.bfloat16).reshape(1, n_total)       # (1, n_total) lane-dense

    part_map = lambda c, j: (c * blocks_per_split + j, 0)

    out = pl.pallas_call(
        _targets_kernel,
        out_shape=jax.ShapeDtypeStruct((n_splits, 1, kh), jnp.float32),
        grid_spec=pltpu.PrefetchScalarGridSpec(
            num_scalar_prefetch=0,
            grid=(n_splits, blocks_per_split),
            in_specs=[
                pl.BlockSpec((f, kh), lambda c, j: (0, 0)),            # loop-invariant weights
                pl.BlockSpec((tile_n, f), part_map),                   # phase
                pl.BlockSpec((1, tile_n),
                             lambda c, j: (0, c * blocks_per_split + j)),  # masses
            ],
            out_specs=pl.BlockSpec((1, 1, kh), lambda c, j: (c, 0, 0)),
        ),
        compiler_params=pltpu.CompilerParams(
            dimension_semantics=("parallel", "arbitrary"),
            vmem_limit_bytes=48 * 1024 * 1024),
    )(w_bf, phase, mass_row)

    total = out[:, 0, :].sum(axis=0)            # combine per-core partials -> (K*H,)
    mtot = jnp.sum(masses.astype(jnp.float32))  # exact f32 total mass for normalization
    return total.reshape(k, h) / mtot           # (K, H)


def _reference_forward(positions, velocities, masses, target_weights):
    """Pure-JAX reference mirroring the kernel's cast points exactly."""
    n = positions.shape[0]
    f32 = jnp.float32
    w = jnp.transpose(target_weights.astype(f32), (1, 0, 2))           # (F, K, H)
    w_bf = w.astype(jnp.bfloat16).astype(f32)                          # kernel weight rounding
    phase = jnp.concatenate(
        [positions.astype(f32), velocities.astype(f32),
         jnp.ones((n, 1), f32), jnp.zeros((n, 1), f32)], axis=1)
    phase_bf = phase.astype(jnp.bfloat16).astype(f32)                  # kernel phase rounding
    z = jnp.einsum("nf,fkh->nkh", phase_bf, w_bf)                      # f32 accumulation
    t = jnp.tanh(z.astype(jnp.bfloat16).astype(f32))                   # tanh of bf16-rounded z
    t = t.astype(jnp.bfloat16).astype(f32)                             # reduce sees bf16 t
    m_bf = masses.astype(jnp.bfloat16).astype(f32)                     # reduce sees bf16 mass
    weighted = jnp.einsum("n,nkh->kh", m_bf, t)                        # f32 accumulation
    return weighted / jnp.sum(masses.astype(f32))                      # (K, H)


if __name__ == "__main__":
    key = jax.random.PRNGKey(0)
    k_pos, k_vel, k_mass, k_w = jax.random.split(key, 4)

    N, K, F, H = 2000, 3, 8, 128   # particles, targets, phase features, observable dim

    positions = jax.random.normal(k_pos, (N, 3), jnp.float32) * 2.0
    velocities = jax.random.normal(k_vel, (N, 3), jnp.float32) * 0.5
    masses = jnp.abs(jax.random.normal(k_mass, (N,), jnp.float32)) + 0.1

    # Deterministic synthetic target parameters: rows 0..5 act on phase space,
    # row 6 is the bias (phase feature 6 == 1), row 7 is unused padding (== 0).
    target_weights = 0.1 * jax.random.normal(k_w, (K, F, H), jnp.float32)
    target_weights = target_weights.at[:, 7, :].set(0.0)

    ref = _reference_forward(positions, velocities, masses, target_weights)

    # Default configuration (single TC, tile_n=1024; N=2000 exercises the zero-mass padding).
    out = dynamical_model_forward(positions, velocities, masses, target_weights)
    out = jax.block_until_ready(out)
    assert out.shape == (K, H)
    assert jnp.allclose(out, ref, rtol=2e-2, atol=5e-3), "mismatch vs reference (n_splits=1)"

    # Two-way split (what you'd use on v7x's dual TensorCores); must give the same answer.
    out2 = dynamical_model_forward(positions, velocities, masses, target_weights,
                                   tile_n=512, n_splits=2)
    out2 = jax.block_until_ready(out2)
    assert jnp.allclose(out2, ref, rtol=2e-2, atol=5e-3), "mismatch vs reference (n_splits=2)"

    # forward() semantics: a list of per-target evaluations
    target_values = [out[i] for i in range(K)]
    assert len(target_values) == K and target_values[0].shape == (H,)

    print("KERNEL_OK")
</pallas_src>

<mosaic_0001>
module attributes {stable_mosaic.version = 11 : i64} {
  func.func @_targets_kernel(%arg0: i32, %arg1: i32, %arg2: memref<8x384xbf16, #tpu.memory_space<vmem>>, %arg3: memref<1024x8xbf16, #tpu.memory_space<vmem>>, %arg4: memref<1x1024xbf16, #tpu.memory_space<vmem>>, %arg5: memref<1x1x384xf32, #tpu.memory_space<vmem>>) attributes {dimension_semantics = [#tpu.dimension_semantics<parallel>, #tpu.dimension_semantics<arbitrary>], iteration_bounds = array<i64: 1, 2>, scalar_prefetch = 0 : i64, scratch_operands = 0 : i64, tpu.core_type = #tpu.core_type<tc>, window_params = [{pipeline_mode = #tpu.pipeline_mode<synchronous>, transform_indices = @transform_0, window_bounds = array<i64: 8, 384>}, {transform_indices = @transform_1, window_bounds = array<i64: 1024, 8>}, {transform_indices = @transform_2, window_bounds = array<i64: 1, 1024>}, {transform_indices = @transform_3, window_bounds = array<i64: 1, 1, 384>}]} {
    %c0_i32 = arith.constant 0 : i32
    %0 = arith.cmpi eq, %arg1, %c0_i32 : i32
    %1 = arith.extui %0 : i1 to i32
    %c0_i32_0 = arith.constant 0 : i32
    %2 = arith.cmpi ne, %1, %c0_i32_0 : i32
    scf.if %2 {
      %cst_13 = arith.constant 0.000000e+00 : f32
      %16 = vector.broadcast %cst_13 : f32 to vector<1x1x384xf32>
      %c0_14 = arith.constant 0 : index
      %c0_15 = arith.constant 0 : index
      %c0_16 = arith.constant 0 : index
      %17 = vector.load %arg5[%c0_14, %c0_15, %c0_16] : memref<1x1x384xf32, #tpu.memory_space<vmem>>, vector<1x1x384xf32>
      tpu.vector_store %arg5[%c0_14, %c0_15, %c0_16], %16 {strides = array<i32>} : memref<1x1x384xf32, #tpu.memory_space<vmem>>, vector<1x1x384xf32>,
    } else {
    }
    %c0 = arith.constant 0 : index
    %c0_1 = arith.constant 0 : index
    %3 = vector.load %arg3[%c0, %c0_1] : memref<1024x8xbf16, #tpu.memory_space<vmem>>, vector<1024x8xbf16>
    %c0_2 = arith.constant 0 : index
    %c0_3 = arith.constant 0 : index
    %4 = vector.load %arg2[%c0_2, %c0_3] : memref<8x384xbf16, #tpu.memory_space<vmem>>, vector<8x384xbf16>
    %cst = arith.constant dense<0.000000e+00> : vector<1024x384xf32>
    %5 = tpu.matmul %3, %4, %cst {dimension_numbers = #tpu.dot_dimension_numbers<[1], [0], [0], [1], [0, 0, 1, 1], [], []>} : vector<1024x8xbf16>, vector<8x384xbf16>, vector<1024x384xf32> -> vector<1024x384xf32>
    %6 = arith.truncf %5 : vector<1024x384xf32> to vector<1024x384xbf16>
    %7 = math.tanh %6 : vector<1024x384xbf16>
    %c0_4 = arith.constant 0 : index
    %c0_5 = arith.constant 0 : index
    %8 = vector.load %arg4[%c0_4, %c0_5] : memref<1x1024xbf16, #tpu.memory_space<vmem>>, vector<1x1024xbf16>
    %cst_6 = arith.constant dense<0.000000e+00> : vector<1x384xf32>
    %9 = tpu.matmul %8, %7, %cst_6 {dimension_numbers = #tpu.dot_dimension_numbers<[1], [0], [0], [1], [0, 0, 1, 1], [], []>} : vector<1x1024xbf16>, vector<1024x384xbf16>, vector<1x384xf32> -> vector<1x384xf32>
    %c0_7 = arith.constant 0 : index
    %c0_8 = arith.constant 0 : index
    %c0_9 = arith.constant 0 : index
    %10 = vector.load %arg5[%c0_7, %c0_8, %c0_9] : memref<1x1x384xf32, #tpu.memory_space<vmem>>, vector<1x1x384xf32>
    %11 = vector.shape_cast %10 : vector<1x1x384xf32> to vector<1x384xf32>
    %12 = arith.addf %11, %9 : vector<1x384xf32>
    %c0_10 = arith.constant 0 : index
    %c0_11 = arith.constant 0 : index
    %c0_12 = arith.constant 0 : index
    %13 = vector.load %arg5[%c0_10, %c0_11, %c0_12] : memref<1x1x384xf32, #tpu.memory_space<vmem>>, vector<1x1x384xf32>
    %14 = vector.shape_cast %13 : vector<1x1x384xf32> to vector<1x384xf32>
    %15 = vector.shape_cast %12 : vector<1x384xf32> to vector<1x1x384xf32>
    tpu.vector_store %arg5[%c0_10, %c0_11, %c0_12], %15 {strides = array<i32>} : memref<1x1x384xf32, #tpu.memory_space<vmem>>, vector<1x1x384xf32>,
    return
  }
  func.func @transform_0(%arg0: i32, %arg1: i32) -> (i32, i32) {
    %c0_i32 = arith.constant 0 : i32
    %c0_i32_0 = arith.constant 0 : i32
    %c0_i32_1 = arith.constant 0 : i32
    return %c0_i32, %c0_i32_0 : i32, i32
  }
  func.func @transform_1(%arg0: i32, %arg1: i32) -> (i32, i32) {
    %c2_i32 = arith.constant 2 : i32
    %0 = arith.muli %arg0, %c2_i32 : i32
    %1 = arith.addi %0, %arg1 : i32
    %c0_i32 = arith.constant 0 : i32
    %c0_i32_0 = arith.constant 0 : i32
    return %1, %c0_i32 : i32, i32
  }
  func.func @transform_2(%arg0: i32, %arg1: i32) -> (i32, i32) {
    %c2_i32 = arith.constant 2 : i32
    %0 = arith.muli %arg0, %c2_i32 : i32
    %1 = arith.addi %0, %arg1 : i32
    %c0_i32 = arith.constant 0 : i32
    %c0_i32_0 = arith.constant 0 : i32
    return %c0_i32, %1 : i32, i32
  }
  func.func @transform_3(%arg0: i32, %arg1: i32) -> (i32, i32, i32) {
    %c0_i32 = arith.constant 0 : i32
    %c0_i32_0 = arith.constant 0 : i32
    %c0_i32_1 = arith.constant 0 : i32
    return %arg0, %c0_i32, %c0_i32_0 : i32, i32, i32
  }
}

</mosaic_0001>

<llo_original>
// kernel: dynamical_model_forward.1
$region0: #{dynamical_model_forward.1}
  #allocation0 [shape = 'u32[]', space=smem, size = 0x4, offset = 0x4, fixed_abs, tag = 'smem constant byte address 0x4 - core index']
  #allocation1 [shape = 'u32[144,128]{1,0:T(1,128)}', space=vmem, size = 0x12000, scoped, tag = 'internal scratch']
  %s0 = inlined_call_operand.vmem [shape: bf16[8,384], index: 0, kind: input, shape index: {}]
  %s1 = inlined_call_operand.vmem [shape: bf16[2048,8], index: 1, kind: input, shape index: {}]
  %s2 = inlined_call_operand.vmem [shape: bf16[1,2048], index: 2, kind: input, shape index: {}]
  %s3 = inlined_call_operand.vmem [shape: f32[1,1,384], index: 3, kind: output, shape index: {}]
  %s4 = sld [smem:[#allocation0]]
  $region49: #{dynamical_model_forward.1} parent=0
    _
  %s6 = ssub.s32 1, %s4
  %s7 = scalar_select 0, %s6, %s4
  loop: start=0, step=1, limit=4
  $region2: #{dynamical_model_forward.1} parent=0 // loop_pre_header
    _
  $region3: #{dynamical_model_forward.1} parent=0 // loop_header
    %s9 = sphi 0, %s13
    %p10 = scmp.ge.s32.totalorder %s9, 4
    %s16 = sphi 0, %s28
    %s17 = sphi 0, %s24
    %s18 = sphi 0, %s16
    %s19 = sphi 0, %s17
    %s20 = sphi 0, %s18
    %s21 = sphi 0, %s19
    %s29 = sphi 0, %s29
    %s31 = sphi 0, %s29
    %s32 = sphi 0, %s31
    %s46 = sphi 0, %s32
    %s56 = sphi 0, %s58
    %s59 = sphi 0, %s56
    %s60 = sphi 0, %s59
    %s76 = sphi 0, %s60
    %s86 = sphi 0, %s88
    %s89 = sphi 0, %s86
    %s90 = sphi 0, %s89
    %s106 = sphi 0, %s90
    %s112 = sphi 0, %s114
    %s115 = sphi 0, %s112
    %s116 = sphi 0, %s115
    %s132 = sphi 0, %s116
  $region4: #{dynamical_model_forward.1} parent=0 // loop_header_branch
    %12 = sbr.rel (%p10) target = $region8
  $region5: #{dynamical_model_forward.1} parent=0 // loop_body
    %s14 = ssub.s32 %s9, 1
    %s15 = ssub.s32 %s9, 2
    %s22 = sadd.s32 1, %s17
    %p23 = scmp.ge.s32.totalorder %s22, 2
    %s24 = scalar_select %p23, 0, %s22
    %s25 = sadd.s32 1, %s16
    %s26 = scalar_select %p23, %s25, %s16
    %p27 = scmp.ge.s32.totalorder %s26, 1
    %s28 = scalar_select %p27, 0, %s26
    %s30 = sadd.s32 %s29, 1
    %p33 = scmp.eq.s32.totalorder %s9, 1
    %p34 = scmp.ne.s32.totalorder %s29, %s31
    %p35 = scmp.eq.s32.totalorder %s9, 0
    %p36 = por %p34, %p35
    %p37 = scmp.ne.s32.totalorder %s29, %s31
    %p38 = scmp.eq.s32.totalorder %s14, 1
    %p39 = por %p37, %p38
    %p40 = scmp.ne.s32.totalorder %s31, %s32
    %p41 = scmp.eq.s32.totalorder %s14, 0
    %p42 = por %p40, %p41
    %p43 = scmp.ne.s32.totalorder %s31, %s32
    %p44 = scmp.eq.s32.totalorder %s15, 1
    %p45 = por %p43, %p44
    %p47 = scmp.ne.s32.totalorder %s32, %s46
    %p48 = scmp.eq.s32.totalorder %s15, 0
    %p49 = por %p47, %p48
    %s50 = smul.u32 %s16, 2
    %s51 = sadd.s32 %s50, %s17
    %s52 = smul.u32 %s28, 2
    %s53 = sadd.s32 %s52, %s24
    %s54 = ssub.s32 %s51, %s53
    %p55 = scmp.eq.s32.totalorder %s54, 0
    %s57 = sadd.s32 %s56, 1
    %s58 = scalar_select %p55, %s56, %s57
    %p61 = pneg %p55
    %p62 = scmp.eq.s32.totalorder %s9, 1
    %p63 = por %p61, %p62
    %p64 = scmp.ne.s32.totalorder %s56, %s59
    %p65 = scmp.eq.s32.totalorder %s9, 0
    %p66 = por %p64, %p65
    %p67 = scmp.ne.s32.totalorder %s56, %s59
    %p68 = scmp.eq.s32.totalorder %s14, 1
    %p69 = por %p67, %p68
    %p70 = scmp.ne.s32.totalorder %s59, %s60
    %p71 = scmp.eq.s32.totalorder %s14, 0
    %p72 = por %p70, %p71
    %p73 = scmp.ne.s32.totalorder %s59, %s60
    %p74 = scmp.eq.s32.totalorder %s15, 1
    %p75 = por %p73, %p74
    %p77 = scmp.ne.s32.totalorder %s60, %s76
    %p78 = scmp.eq.s32.totalorder %s15, 0
    %p79 = por %p77, %p78
    %s80 = smul.u32 %s16, 2
    %s81 = sadd.s32 %s80, %s17
    %s82 = smul.u32 %s28, 2
    %s83 = sadd.s32 %s82, %s24
    %s84 = ssub.s32 %s81, %s83
    %p85 = scmp.eq.s32.totalorder %s84, 0
    %s87 = sadd.s32 %s86, 1
    %s88 = scalar_select %p85, %s86, %s87
    %p91 = pneg %p85
    %p92 = scmp.eq.s32.totalorder %s9, 1
    %p93 = por %p91, %p92
    %p94 = scmp.ne.s32.totalorder %s86, %s89
    %p95 = scmp.eq.s32.totalorder %s9, 0
    %p96 = por %p94, %p95
    %p97 = scmp.ne.s32.totalorder %s86, %s89
    %p98 = scmp.eq.s32.totalorder %s14, 1
    %p99 = por %p97, %p98
    %p100 = scmp.ne.s32.totalorder %s89, %s90
    %p101 = scmp.eq.s32.totalorder %s14, 0
    %p102 = por %p100, %p101
    %p103 = scmp.ne.s32.totalorder %s89, %s90
    %p104 = scmp.eq.s32.totalorder %s15, 1
    %p105 = por %p103, %p104
    %p107 = scmp.ne.s32.totalorder %s90, %s106
    %p108 = scmp.eq.s32.totalorder %s15, 0
    %p109 = por %p107, %p108
    %s110 = ssub.s32 %s16, %s28
    %p111 = scmp.eq.s32.totalorder %s110, 0
    %s113 = sadd.s32 %s112, 1
    %s114 = scalar_select %p111, %s112, %s113
    %p117 = pneg %p111
    %p118 = scmp.eq.s32.totalorder %s9, 1
    %p119 = por %p117, %p118
    %p120 = scmp.ne.s32.totalorder %s112, %s115
    %p121 = scmp.eq.s32.totalorder %s9, 0
    %p122 = por %p120, %p121
    %p123 = scmp.ne.s32.totalorder %s112, %s115
    %p124 = scmp.eq.s32.totalorder %s14, 1
    %p125 = por %p123, %p124
    %p126 = scmp.ne.s32.totalorder %s115, %s116
    %p127 = scmp.eq.s32.totalorder %s14, 0
    %p128 = por %p126, %p127
    %p129 = scmp.ne.s32.totalorder %s115, %s116
    %p130 = scmp.eq.s32.totalorder %s15, 1
    %p131 = por %p129, %p130
    %p133 = scmp.ne.s32.totalorder %s116, %s132
    %p134 = scmp.eq.s32.totalorder %s15, 0
    %p135 = por %p133, %p134
    %p136 = scmp.le.s32.totalorder 1, %s9
    %p137 = scmp.lt.s32.totalorder %s9, 3
    %p138 = pnand %p136, %p137
    %p139 = pneg %p138
    // Predicated region
    $region9: #{dynamical_model_forward.1} parent=5 // pred_check
      _
    $region10: #{dynamical_model_forward.1} parent=5 // pred_check_branch
      %141 = sbr.rel (%p138) target = $region12
    $region11: #{dynamical_model_forward.1} parent=5 // pred_region
      %s142 = ssub.s32 %s9, 1
      // Predicated region
      $region13: #{dynamical_model_forward.1} parent=11 // pred_check
        %p143 = pneg %p42
      $region14: #{dynamical_model_forward.1} parent=11 // pred_check_branch
        %145 = sbr.rel (%p143) target = $region16
      $region15: #{dynamical_model_forward.1} parent=11 // pred_region
        _
      $region16: #{dynamical_model_forward.1} parent=11 // pred_fallthru
        _
    $region12: #{dynamical_model_forward.1} parent=5 // pred_fallthru
      _
    %p146 = scmp.lt.s32.totalorder %s9, 2
    // Predicated region
    $region17: #{dynamical_model_forward.1} parent=5 // pred_check
      %p147 = pneg %p146
    $region18: #{dynamical_model_forward.1} parent=5 // pred_check_branch
      %149 = sbr.rel (%p147) target = $region20
    $region19: #{dynamical_model_forward.1} parent=5 // pred_region
      // Predicated region
      $region21: #{dynamical_model_forward.1} parent=19 // pred_check
        %p150 = pneg %p66
      $region22: #{dynamical_model_forward.1} parent=19 // pred_check_branch
        %152 = sbr.rel (%p150) target = $region24
      $region23: #{dynamical_model_forward.1} parent=19 // pred_region
        %s153 = smul.u32 %s16, 2
        %s154 = sadd.s32 %s153, %s17
        %s155 = smul.u32 128, %s154
        %p156 = scmp.lt.s32.totalorder %s155, 255
        %s157 = scalar_select %p156, %s155, 255
        %s158 = smul.addr %s157, 4
        %s159 = scalar_lea.vmem %s1, %s158
        %s160 = smul.u32 %s16, 2
        %s161 = sadd.s32 %s160, %s17
        %s162 = smul.u32 128, %s161
      $region24: #{dynamical_model_forward.1} parent=19 // pred_fallthru
        _
      // Predicated region
      $region25: #{dynamical_model_forward.1} parent=19 // pred_check
        %p163 = pneg %p96
      $region26: #{dynamical_model_forward.1} parent=19 // pred_check_branch
        %165 = sbr.rel (%p163) target = $region28
      $region27: #{dynamical_model_forward.1} parent=19 // pred_region
        %s166 = smul.u32 %s16, 2
        %s167 = sadd.s32 %s166, %s17
        %s168 = smul.u32 8, %s167
        %p169 = scmp.lt.s32.totalorder %s168, 15
        %s170 = scalar_select %p169, %s168, 15
        %s171 = scalar_lea.vmem %s2, %s170
        %s172 = smul.u32 %s16, 2
        %s173 = sadd.s32 %s172, %s17
        %s174 = smul.u32 8, %s173
      $region28: #{dynamical_model_forward.1} parent=19 // pred_fallthru
        _
    $region20: #{dynamical_model_forward.1} parent=5 // pred_fallthru
      _
    %p175 = scmp.le.s32.totalorder 1, %s9
    %p176 = scmp.lt.s32.totalorder %s9, 3
    %p177 = pnand %p175, %p176
    %p178 = pneg %p177
    // Predicated region
    $region29: #{dynamical_model_forward.1} parent=5 // pred_check
      _
    $region30: #{dynamical_model_forward.1} parent=5 // pred_check_branch
      %180 = sbr.rel (%p177) target = $region32
    $region31: #{dynamical_model_forward.1} parent=5 // pred_region
      %s181 = ssub.s32 %s9, 1
      %p182 = pneg %p42
      %p183 = pneg %p39
      %s184 = smul.u32 %s18, 2
      %s185 = sadd.s32 %s184, %s19
      %s186 = smul.u32 128, %s185
      %p187 = scmp.lt.s32.totalorder %s186, 255
      %s188 = scalar_select %p187, %s186, 255
      %s189 = smul.addr %s188, 4
      %s190 = scalar_lea.vmem %s1, %s189
      %p191 = pneg %p72
      %p192 = pneg %p69
      %s193 = smul.u32 %s18, 2
      %s194 = sadd.s32 %s193, %s19
      %s195 = smul.u32 8, %s194
      %p196 = scmp.lt.s32.totalorder %s195, 15
      %s197 = scalar_select %p196, %s195, 15
      %s198 = scalar_lea.vmem %s2, %s197
      %p199 = pneg %p102
      %p200 = pneg %p99
      %p201 = pneg %p128
      %p202 = pneg %p125
      %p203 = scmp.lt.s32.totalorder %s18, 0
      %s204 = scalar_select %p203, %s18, 0
      %s205 = smul.addr %s204, 3
      %s206 = scalar_lea.vmem %s3, %s205
      %s207 = smul.u32 %s18, 2
      %s208 = sadd.s32 %s207, %s19
      %s209 = smul.u32 128, %s208
      %p210 = scmp.lt.s32.totalorder %s209, 255
      %s211 = scalar_select %p210, %s209, 255
      %s212 = smul.addr %s211, 4
      %s213 = scalar_lea.vmem %s1, %s212
      %s214 = smul.u32 %s18, 2
      %s215 = sadd.s32 %s214, %s19
      %s216 = smul.u32 128, %s215
      %s217 = smul.u32 %s18, 2
      %s218 = sadd.s32 %s217, %s19
      %s219 = smul.u32 8, %s218
      %p220 = scmp.lt.s32.totalorder %s219, 15
      %s221 = scalar_select %p220, %s219, 15
      %s222 = scalar_lea.vmem %s2, %s221
      %s223 = smul.u32 %s18, 2
      %s224 = sadd.s32 %s223, %s19
      %s225 = smul.u32 8, %s224
      %p226 = scmp.lt.s32.totalorder %s18, 0
      %s227 = scalar_select %p226, %s18, 0
      %s228 = smul.addr %s227, 3
      %s229 = scalar_lea.vmem %s3, %s228
      %p231 = scmp.eq.s32.totalorder %s19, 0
      // Predicated region
      $region33: #{dynamical_model_forward.1} parent=31 // pred_check
        %p232 = pneg %p231
      $region34: #{dynamical_model_forward.1} parent=31 // pred_check_branch
        %234 = sbr.rel (%p232) target = $region36
      $region35: #{dynamical_model_forward.1} parent=31 // pred_region
        %v235 = vlaneseq
        %vm236 = vcmp.ge.s32.totalorder %v235, 0
        %vm237 = vcmp.lt.s32.totalorder %v235, 384
        %vm238 = vmand %vm236, %vm237
        %239 = vst.msk [vmem:[%s229] sm:$0x7] %vm238, 0.0
      $region36: #{dynamical_model_forward.1} parent=31 // pred_fallthru
        _
      %v240 = vld [vmem:[%s213] sm:$0xf]
      %v241 = vld [vmem:[%s213 + $0x4] sm:$0xf]
      %v242 = vld [vmem:[%s213 + $0x8] sm:$0xf]
      %v243 = vld [vmem:[%s213 + $0xc] sm:$0xf]
      %v244 = vld [vmem:[%s213 + $0x10] sm:$0xf]
      %v245 = vld [vmem:[%s213 + $0x14] sm:$0xf]
      %v246 = vld [vmem:[%s213 + $0x18] sm:$0xf]
      %v247 = vld [vmem:[%s213 + $0x1c] sm:$0xf]
      %v248 = vld [vmem:[%s213 + $0x20] sm:$0xf]
      %v249 = vld [vmem:[%s213 + $0x24] sm:$0xf]
      %v250 = vld [vmem:[%s213 + $0x28] sm:$0xf]
      %v251 = vld [vmem:[%s213 + $0x2c] sm:$0xf]
      %v252 = vld [vmem:[%s213 + $0x30] sm:$0xf]
      %v253 = vld [vmem:[%s213 + $0x34] sm:$0xf]
      %v254 = vld [vmem:[%s213 + $0x38] sm:$0xf]
      %v255 = vld [vmem:[%s213 + $0x3c] sm:$0xf]
      %v256 = vld [vmem:[%s213 + $0x40] sm:$0xf]
      %v257 = vld [vmem:[%s213 + $0x44] sm:$0xf]
      %v258 = vld [vmem:[%s213 + $0x48] sm:$0xf]
      %v259 = vld [vmem:[%s213 + $0x4c] sm:$0xf]
      %v260 = vld [vmem:[%s213 + $0x50] sm:$0xf]
      %v261 = vld [vmem:[%s213 + $0x54] sm:$0xf]
      %v262 = vld [vmem:[%s213 + $0x58] sm:$0xf]
      %v263 = vld [vmem:[%s213 + $0x5c] sm:$0xf]
      %v264 = vld [vmem:[%s213 + $0x60] sm:$0xf]
      %v265 = vld [vmem:[%s213 + $0x64] sm:$0xf]
      %v266 = vld [vmem:[%s213 + $0x68] sm:$0xf]
      %v267 = vld [vmem:[%s213 + $0x6c] sm:$0xf]
      %v268 = vld [vmem:[%s213 + $0x70] sm:$0xf]
      %v269 = vld [vmem:[%s213 + $0x74] sm:$0xf]
      %v270 = vld [vmem:[%s213 + $0x78] sm:$0xf]
      %v271 = vld [vmem:[%s213 + $0x7c] sm:$0xf]
      %v272 = vld [vmem:[%s213 + $0x80] sm:$0xf]
      %v273 = vld [vmem:[%s213 + $0x84] sm:$0xf]
      %v274 = vld [vmem:[%s213 + $0x88] sm:$0xf]
      %v275 = vld [vmem:[%s213 + $0x8c] sm:$0xf]
      %v276 = vld [vmem:[%s213 + $0x90] sm:$0xf]
      %v277 = vld [vmem:[%s213 + $0x94] sm:$0xf]
      %v278 = vld [vmem:[%s213 + $0x98] sm:$0xf]
      %v279 = vld [vmem:[%s213 + $0x9c] sm:$0xf]
      %v280 = vld [vmem:[%s213 + $0xa0] sm:$0xf]
      %v281 = vld [vmem:[%s213 + $0xa4] sm:$0xf]
      %v282 = vld [vmem:[%s213 + $0xa8] sm:$0xf]
      %v283 = vld [vmem:[%s213 + $0xac] sm:$0xf]
      %v284 = vld [vmem:[%s213 + $0xb0] sm:$0xf]
      %v285 = vld [vmem:[%s213 + $0xb4] sm:$0xf]
      %v286 = vld [vmem:[%s213 + $0xb8] sm:$0xf]
      %v287 = vld [vmem:[%s213 + $0xbc] sm:$0xf]
      %v288 = vld [vmem:[%s213 + $0xc0] sm:$0xf]
      %v289 = vld [vmem:[%s213 + $0xc4] sm:$0xf]
      %v290 = vld [vmem:[%s213 + $0xc8] sm:$0xf]
      %v291 = vld [vmem:[%s213 + $0xcc] sm:$0xf]
      %v292 = vld [vmem:[%s213 + $0xd0] sm:$0xf]
      %v293 = vld [vmem:[%s213 + $0xd4] sm:$0xf]
      %v294 = vld [vmem:[%s213 + $0xd8] sm:$0xf]
      %v295 = vld [vmem:[%s213 + $0xdc] sm:$0xf]
      %v296 = vld [vmem:[%s213 + $0xe0] sm:$0xf]
      %v297 = vld [vmem:[%s213 + $0xe4] sm:$0xf]
      %v298 = vld [vmem:[%s213 + $0xe8] sm:$0xf]
      %v299 = vld [vmem:[%s213 + $0xec] sm:$0xf]
      %v300 = vld [vmem:[%s213 + $0xf0] sm:$0xf]
      %v301 = vld [vmem:[%s213 + $0xf4] sm:$0xf]
      %v302 = vld [vmem:[%s213 + $0xf8] sm:$0xf]
      %v303 = vld [vmem:[%s213 + $0xfc] sm:$0xf]
      %v304 = vld [vmem:[%s213 + $0x100] sm:$0xf]
      %v305 = vld [vmem:[%s213 + $0x104] sm:$0xf]
      %v306 = vld [vmem:[%s213 + $0x108] sm:$0xf]
      %v307 = vld [vmem:[%s213 + $0x10c] sm:$0xf]
      %v308 = vld [vmem:[%s213 + $0x110] sm:$0xf]
      %v309 = vld [vmem:[%s213 + $0x114] sm:$0xf]
      %v310 = vld [vmem:[%s213 + $0x118] sm:$0xf]
      %v311 = vld [vmem:[%s213 + $0x11c] sm:$0xf]
      %v312 = vld [vmem:[%s213 + $0x120] sm:$0xf]
      %v313 = vld [vmem:[%s213 + $0x124] sm:$0xf]
      %v314 = vld [vmem:[%s213 + $0x128] sm:$0xf]
      %v315 = vld [vmem:[%s213 + $0x12c] sm:$0xf]
      %v316 = vld [vmem:[%s213 + $0x130] sm:$0xf]
      %v317 = vld [vmem:[%s213 + $0x134] sm:$0xf]
      %v318 = vld [vmem:[%s213 + $0x138] sm:$0xf]
      %v319 = vld [vmem:[%s213 + $0x13c] sm:$0xf]
      %v320 = vld [vmem:[%s213 + $0x140] sm:$0xf]
      %v321 = vld [vmem:[%s213 + $0x144] sm:$0xf]
      %v322 = vld [vmem:[%s213 + $0x148] sm:$0xf]
      %v323 = vld [vmem:[%s213 + $0x14c] sm:$0xf]
      %v324 = vld [vmem:[%s213 + $0x150] sm:$0xf]
      %v325 = vld [vmem:[%s213 + $0x154] sm:$0xf]
      %v326 = vld [vmem:[%s213 + $0x158] sm:$0xf]
      %v327 = vld [vmem:[%s213 + $0x15c] sm:$0xf]
      %v328 = vld [vmem:[%s213 + $0x160] sm:$0xf]
      %v329 = vld [vmem:[%s213 + $0x164] sm:$0xf]
      %v330 = vld [vmem:[%s213 + $0x168] sm:$0xf]
      %v331 = vld [vmem:[%s213 + $0x16c] sm:$0xf]
      %v332 = vld [vmem:[%s213 + $0x170] sm:$0xf]
      %v333 = vld [vmem:[%s213 + $0x174] sm:$0xf]
      %v334 = vld [vmem:[%s213 + $0x178] sm:$0xf]
      %v335 = vld [vmem:[%s213 + $0x17c] sm:$0xf]
      %v336 = vld [vmem:[%s213 + $0x180] sm:$0xf]
      %v337 = vld [vmem:[%s213 + $0x184] sm:$0xf]
      %v338 = vld [vmem:[%s213 + $0x188] sm:$0xf]
      %v339 = vld [vmem:[%s213 + $0x18c] sm:$0xf]
      %v340 = vld [vmem:[%s213 + $0x190] sm:$0xf]
      %v341 = vld [vmem:[%s213 + $0x194] sm:$0xf]
      %v342 = vld [vmem:[%s213 + $0x198] sm:$0xf]
      %v343 = vld [vmem:[%s213 + $0x19c] sm:$0xf]
      %v344 = vld [vmem:[%s213 + $0x1a0] sm:$0xf]
      %v345 = vld [vmem:[%s213 + $0x1a4] sm:$0xf]
      %v346 = vld [vmem:[%s213 + $0x1a8] sm:$0xf]
      %v347 = vld [vmem:[%s213 + $0x1ac] sm:$0xf]
      %v348 = vld [vmem:[%s213 + $0x1b0] sm:$0xf]
      %v349 = vld [vmem:[%s213 + $0x1b4] sm:$0xf]
      %v350 = vld [vmem:[%s213 + $0x1b8] sm:$0xf]
      %v351 = vld [vmem:[%s213 + $0x1bc] sm:$0xf]
      %v352 = vld [vmem:[%s213 + $0x1c0] sm:$0xf]
      %v353 = vld [vmem:[%s213 + $0x1c4] sm:$0xf]
      %v354 = vld [vmem:[%s213 + $0x1c8] sm:$0xf]
      %v355 = vld [vmem:[%s213 + $0x1cc] sm:$0xf]
      %v356 = vld [vmem:[%s213 + $0x1d0] sm:$0xf]
      %v357 = vld [vmem:[%s213 + $0x1d4] sm:$0xf]
      %v358 = vld [vmem:[%s213 + $0x1d8] sm:$0xf]
      %v359 = vld [vmem:[%s213 + $0x1dc] sm:$0xf]
      %v360 = vld [vmem:[%s213 + $0x1e0] sm:$0xf]
      %v361 = vld [vmem:[%s213 + $0x1e4] sm:$0xf]
      %v362 = vld [vmem:[%s213 + $0x1e8] sm:$0xf]
      %v363 = vld [vmem:[%s213 + $0x1ec] sm:$0xf]
      %v364 = vld [vmem:[%s213 + $0x1f0] sm:$0xf]
      %v365 = vld [vmem:[%s213 + $0x1f4] sm:$0xf]
      %v366 = vld [vmem:[%s213 + $0x1f8] sm:$0xf]
      %v367 = vld [vmem:[%s213 + $0x1fc] sm:$0xf]
      %v368 = vld [vmem:[%s0] sm:$0xff]
      %v369 = vld [vmem:[%s0 + $0x8] sm:$0xf]
      %v498 = vunpack.c.l.b16 %v240
      %v499 = vunpack.c.l.b16 %v241
      %v500 = vunpack.c.l.b16 %v242
      %v501 = vunpack.c.l.b16 %v243
      %v502 = vunpack.c.l.b16 %v244
      %v503 = vunpack.c.l.b16 %v245
      %v504 = vunpack.c.l.b16 %v246
      %v505 = vunpack.c.l.b16 %v247
      %v506 = vunpack.c.l.b16 %v248
      %v507 = vunpack.c.l.b16 %v249
      %v508 = vunpack.c.l.b16 %v250
      %v509 = vunpack.c.l.b16 %v251
      %v510 = vunpack.c.l.b16 %v252
      %v511 = vunpack.c.l.b16 %v253
      %v512 = vunpack.c.l.b16 %v254
      %v513 = vunpack.c.l.b16 %v255
      %v514 = vunpack.c.l.b16 %v256
      %v515 = vunpack.c.l.b16 %v257
      %v516 = vunpack.c.l.b16 %v258
      %v517 = vunpack.c.l.b16 %v259
      %v518 = vunpack.c.l.b16 %v260
      %v519 = vunpack.c.l.b16 %v261
      %v520 = vunpack.c.l.b16 %v262
      %v521 = vunpack.c.l.b16 %v263
      %v522 = vunpack.c.l.b16 %v264
      %v523 = vunpack.c.l.b16 %v265
      %v524 = vunpack.c.l.b16 %v266
      %v525 = vunpack.c.l.b16 %v267
      %v526 = vunpack.c.l.b16 %v268
      %v527 = vunpack.c.l.b16 %v269
      %v528 = vunpack.c.l.b16 %v270
      %v529 = vunpack.c.l.b16 %v271
      %v530 = vunpack.c.l.b16 %v272
      %v531 = vunpack.c.l.b16 %v273
      %v532 = vunpack.c.l.b16 %v274
      %v533 = vunpack.c.l.b16 %v275
      %v534 = vunpack.c.l.b16 %v276
      %v535 = vunpack.c.l.b16 %v277
      %v536 = vunpack.c.l.b16 %v278
      %v537 = vunpack.c.l.b16 %v279
      %v538 = vunpack.c.l.b16 %v280
      %v539 = vunpack.c.l.b16 %v281
      %v540 = vunpack.c.l.b16 %v282
      %v541 = vunpack.c.l.b16 %v283
      %v542 = vunpack.c.l.b16 %v284
      %v543 = vunpack.c.l.b16 %v285
      %v544 = vunpack.c.l.b16 %v286
      %v545 = vunpack.c.l.b16 %v287
      %v546 = vunpack.c.l.b16 %v288
      %v547 = vunpack.c.l.b16 %v289
      %v548 = vunpack.c.l.b16 %v290
      %v549 = vunpack.c.l.b16 %v291
      %v550 = vunpack.c.l.b16 %v292
      %v551 = vunpack.c.l.b16 %v293
      %v552 = vunpack.c.l.b16 %v294
      %v553 = vunpack.c.l.b16 %v295
      %v554 = vunpack.c.l.b16 %v296
      %v555 = vunpack.c.l.b16 %v297
      %v556 = vunpack.c.l.b16 %v298
      %v557 = vunpack.c.l.b16 %v299
      %v558 = vunpack.c.l.b16 %v300
      %v559 = vunpack.c.l.b16 %v301
      %v560 = vunpack.c.l.b16 %v302
      %v561 = vunpack.c.l.b16 %v303
      %v562 = vunpack.c.l.b16 %v304
      %v563 = vunpack.c.l.b16 %v305
      %v564 = vunpack.c.l.b16 %v306
      %v565 = vunpack.c.l.b16 %v307
      %v566 = vunpack.c.l.b16 %v308
      %v567 = vunpack.c.l.b16 %v309
      %v568 = vunpack.c.l.b16 %v310
      %v569 = vunpack.c.l.b16 %v311
      %v570 = vunpack.c.l.b16 %v312
      %v571 = vunpack.c.l.b16 %v313
      %v572 = vunpack.c.l.b16 %v314
      %v573 = vunpack.c.l.b16 %v315
      %v574 = vunpack.c.l.b16 %v316
      %v575 = vunpack.c.l.b16 %v317
      %v576 = vunpack.c.l.b16 %v318
      %v577 = vunpack.c.l.b16 %v319
      %v578 = vunpack.c.l.b16 %v320
      %v579 = vunpack.c.l.b16 %v321
      %v580 = vunpack.c.l.b16 %v322
      %v581 = vunpack.c.l.b16 %v323
      %v582 = vunpack.c.l.b16 %v324
      %v583 = vunpack.c.l.b16 %v325
      %v584 = vunpack.c.l.b16 %v326
      %v585 = vunpack.c.l.b16 %v327
      %v586 = vunpack.c.l.b16 %v328
      %v587 = vunpack.c.l.b16 %v329
      %v588 = vunpack.c.l.b16 %v330
      %v589 = vunpack.c.l.b16 %v331
      %v590 = vunpack.c.l.b16 %v332
      %v591 = vunpack.c.l.b16 %v333
      %v592 = vunpack.c.l.b16 %v334
      %v593 = vunpack.c.l.b16 %v335
      %v594 = vunpack.c.l.b16 %v336
      %v595 = vunpack.c.l.b16 %v337
      %v596 = vunpack.c.l.b16 %v338
      %v597 = vunpack.c.l.b16 %v339
      %v598 = vunpack.c.l.b16 %v340
      %v599 = vunpack.c.l.b16 %v341
      %v600 = vunpack.c.l.b16 %v342
      %v601 = vunpack.c.l.b16 %v343
      %v602 = vunpack.c.l.b16 %v344
      %v603 = vunpack.c.l.b16 %v345
      %v604 = vunpack.c.l.b16 %v346
      %v605 = vunpack.c.l.b16 %v347
      %v606 = vunpack.c.l.b16 %v348
      %v607 = vunpack.c.l.b16 %v349
      %v608 = vunpack.c.l.b16 %v350
      %v609 = vunpack.c.l.b16 %v351
      %v610 = vunpack.c.l.b16 %v352
      %v611 = vunpack.c.l.b16 %v353
      %v612 = vunpack.c.l.b16 %v354
      %v613 = vunpack.c.l.b16 %v355
      %v614 = vunpack.c.l.b16 %v356
      %v615 = vunpack.c.l.b16 %v357
      %v616 = vunpack.c.l.b16 %v358
      %v617 = vunpack.c.l.b16 %v359
      %v618 = vunpack.c.l.b16 %v360
      %v619 = vunpack.c.l.b16 %v361
      %v620 = vunpack.c.l.b16 %v362
      %v621 = vunpack.c.l.b16 %v363
      %v622 = vunpack.c.l.b16 %v364
      %v623 = vunpack.c.l.b16 %v365
      %v624 = vunpack.c.l.b16 %v366
      %v625 = vunpack.c.l.b16 %v367
      %v626 = vpack.c.b16 %v499, %v498
      %v627 = vpack.c.b16 %v501, %v500
      %v628 = vpack.c.b16 %v503, %v502
      %v629 = vpack.c.b16 %v505, %v504
      %v630 = vpack.c.b16 %v507, %v506
      %v631 = vpack.c.b16 %v509, %v508
      %v632 = vpack.c.b16 %v511, %v510
      %v633 = vpack.c.b16 %v513, %v512
      %v634 = vpack.c.b16 %v515, %v514
      %v635 = vpack.c.b16 %v517, %v516
      %v636 = vpack.c.b16 %v519, %v518
      %v637 = vpack.c.b16 %v521, %v520
      %v638 = vpack.c.b16 %v523, %v522
      %v639 = vpack.c.b16 %v525, %v524
      %v640 = vpack.c.b16 %v527, %v526
      %v641 = vpack.c.b16 %v529, %v528
      %v642 = vpack.c.b16 %v531, %v530
      %v643 = vpack.c.b16 %v533, %v532
      %v644 = vpack.c.b16 %v535, %v534
      %v645 = vpack.c.b16 %v537, %v536
      %v646 = vpack.c.b16 %v539, %v538
      %v647 = vpack.c.b16 %v541, %v540
      %v648 = vpack.c.b16 %v543, %v542
      %v649 = vpack.c.b16 %v545, %v544
      %v650 = vpack.c.b16 %v547, %v546
      %v651 = vpack.c.b16 %v549, %v548
      %v652 = vpack.c.b16 %v551, %v550
      %v653 = vpack.c.b16 %v553, %v552
      %v654 = vpack.c.b16 %v555, %v554
      %v655 = vpack.c.b16 %v557, %v556
      %v656 = vpack.c.b16 %v559, %v558
      %v657 = vpack.c.b16 %v561, %v560
      %v658 = vpack.c.b16 %v563, %v562
      %v659 = vpack.c.b16 %v565, %v564
      %v660 = vpack.c.b16 %v567, %v566
      %v661 = vpack.c.b16 %v569, %v568
      %v662 = vpack.c.b16 %v571, %v570
      %v663 = vpack.c.b16 %v573, %v572
      %v664 = vpack.c.b16 %v575, %v574
      %v665 = vpack.c.b16 %v577, %v576
      %v666 = vpack.c.b16 %v579, %v578
      %v667 = vpack.c.b16 %v581, %v580
      %v668 = vpack.c.b16 %v583, %v582
      %v669 = vpack.c.b16 %v585, %v584
      %v670 = vpack.c.b16 %v587, %v586
      %v671 = vpack.c.b16 %v589, %v588
      %v672 = vpack.c.b16 %v591, %v590
      %v673 = vpack.c.b16 %v593, %v592
      %v674 = vpack.c.b16 %v595, %v594
      %v675 = vpack.c.b16 %v597, %v596
      %v676 = vpack.c.b16 %v599, %v598
      %v677 = vpack.c.b16 %v601, %v600
      %v678 = vpack.c.b16 %v603, %v602
      %v679 = vpack.c.b16 %v605, %v604
      %v680 = vpack.c.b16 %v607, %v606
      %v681 = vpack.c.b16 %v609, %v608
      %v682 = vpack.c.b16 %v611, %v610
      %v683 = vpack.c.b16 %v613, %v612
      %v684 = vpack.c.b16 %v615, %v614
      %v685 = vpack.c.b16 %v617, %v616
      %v686 = vpack.c.b16 %v619, %v618
      %v687 = vpack.c.b16 %v621, %v620
      %v688 = vpack.c.b16 %v623, %v622
      %v689 = vpack.c.b16 %v625, %v624
      %v692 = vunpack.c.l.b16 %v368
      %v693 = vunpack.c.h.b16 %v368
      %v694 = vunpack.c.l.b16 %v369
      %v695 = vpack.c.b16 %v692, %v692
      %v696 = vpack.c.b16 %v693, %v693
      %v697 = vpack.c.b16 %v694, %v694
      %vm698 = vcmask 64512
      %v700 = vsel %vm698, %v626, 0
      %v703 = vsel %vm698, %v627, 0
      %v706 = vsel %vm698, %v628, 0
      %v709 = vsel %vm698, %v629, 0
      %v712 = vsel %vm698, %v630, 0
      %v715 = vsel %vm698, %v631, 0
      %v718 = vsel %vm698, %v632, 0
      %v721 = vsel %vm698, %v633, 0
      %v724 = vsel %vm698, %v634, 0
      %v727 = vsel %vm698, %v635, 0
      %v730 = vsel %vm698, %v636, 0
      %v733 = vsel %vm698, %v637, 0
      %v736 = vsel %vm698, %v638, 0
      %v739 = vsel %vm698, %v639, 0
      %v742 = vsel %vm698, %v640, 0
      %v745 = vsel %vm698, %v641, 0
      %v748 = vsel %vm698, %v642, 0
      %v751 = vsel %vm698, %v643, 0
      %v754 = vsel %vm698, %v644, 0
      %v757 = vsel %vm698, %v645, 0
      %v760 = vsel %vm698, %v646, 0
      %v763 = vsel %vm698, %v647, 0
      %v766 = vsel %vm698, %v648, 0
      %v769 = vsel %vm698, %v649, 0
      %v772 = vsel %vm698, %v650, 0
      %v775 = vsel %vm698, %v651, 0
      %v778 = vsel %vm698, %v652, 0
      %v781 = vsel %vm698, %v653, 0
      %v784 = vsel %vm698, %v654, 0
      %v787 = vsel %vm698, %v655, 0
      %v790 = vsel %vm698, %v656, 0
      %v793 = vsel %vm698, %v657, 0
      %v796 = vsel %vm698, %v658, 0
      %v799 = vsel %vm698, %v659, 0
      %v802 = vsel %vm698, %v660, 0
      %v805 = vsel %vm698, %v661, 0
      %v808 = vsel %vm698, %v662, 0
      %v811 = vsel %vm698, %v663, 0
      %v814 = vsel %vm698, %v664, 0
      %v817 = vsel %vm698, %v665, 0
      %v820 = vsel %vm698, %v666, 0
      %v823 = vsel %vm698, %v667, 0
      %v826 = vsel %vm698, %v668, 0
      %v829 = vsel %vm698, %v669, 0
      %v832 = vsel %vm698, %v670, 0
      %v835 = vsel %vm698, %v671, 0
      %v838 = vsel %vm698, %v672, 0
      %v841 = vsel %vm698, %v673, 0
      %v844 = vsel %vm698, %v674, 0
      %v847 = vsel %vm698, %v675, 0
      %v850 = vsel %vm698, %v676, 0
      %v853 = vsel %vm698, %v677, 0
      %v856 = vsel %vm698, %v678, 0
      %v859 = vsel %vm698, %v679, 0
      %v862 = vsel %vm698, %v680, 0
      %v865 = vsel %vm698, %v681, 0
      %v868 = vsel %vm698, %v682, 0
      %v871 = vsel %vm698, %v683, 0
      %v874 = vsel %vm698, %v684, 0
      %v877 = vsel %vm698, %v685, 0
      %v880 = vsel %vm698, %v686, 0
      %v883 = vsel %vm698, %v687, 0
      %v886 = vsel %vm698, %v688, 0
      %v889 = vsel %vm698, %v689, 0
      %vm891 = vcmask 1043456
      %v893 = vsel %vm891, %v695, 0
      %v896 = vsel %vm891, %v696, 0
      %v899 = vsel %vm891, %v697, 0
      %901 = vmatprep.subr.bf16.mxu0 %v896
      %902 = vmatpush1.bf16.msra.mxu0 %v893
      %903 = vmatprep.subr.bf16.mxu0 0
      %904 = vmatpush1.bf16.msra.mxu0 0
      %905 = vmatprep.subr.bf16.mxu0 0
      %906 = vmatpush1.bf16.msra.mxu0 0
      %907 = vmatprep.subr.bf16.mxu0 0
      %908 = vmatpush1.bf16.msra.mxu0 0
      %909 = vmatprep.subr.bf16.mxu0 0
      %910 = vmatpush1.bf16.msra.mxu0 0
      %911 = vmatprep.subr.bf16.mxu0 0
      %912 = vmatpush1.bf16.msra.mxu0 0
      %913 = vmatprep.subr.bf16.mxu0 0
      %914 = vmatpush1.bf16.msra.mxu0 0
      %915 = vmatprep.subr.bf16.mxu0 0
      %916 = vmatpush1.bf16.msra.mxu0 0
      %917 = vmatprep.subr.bf16.mxu0 0
      %918 = vmatpush1.bf16.msra.mxu0 0
      %919 = vmatprep.subr.bf16.mxu0 0
      %920 = vmatpush1.bf16.msra.mxu0 0
      %921 = vmatprep.subr.bf16.mxu0 0
      %922 = vmatpush1.bf16.msra.mxu0 0
      %923 = vmatprep.subr.bf16.mxu0 0
      %924 = vmatpush1.bf16.msra.mxu0 0
      %925 = vmatprep.subr.bf16.mxu0 0
      %926 = vmatpush1.bf16.msra.mxu0 0
      %927 = vmatprep.subr.bf16.mxu0 0
      %928 = vmatpush1.bf16.msra.mxu0 0
      %929 = vmatprep.subr.bf16.mxu0 0
      %930 = vmatpush1.bf16.msra.mxu0 0
      %931 = vmatprep.subr.bf16.mxu0 0
      %932 = vmatpush1.bf16.msra.mxu0 0
      %933 = vmatprep.mubr.bf16.mxu0 0
      %934 = vmatmul.mubr.bf16.gmra.mrb[0].mxu0 %v700
      %v935 = vpop.f32.mrb[0].mxu0
      %v936 = vadd.f32 0.0, %v935
      %v937 = vpop.f32.mrb[0].mxu0
      %v938 = vadd.f32 0.0, %v937
      %v939 = vpop.f32.mrb[0].mxu0
      %v940 = vadd.f32 0.0, %v939
      %v941 = vpop.f32.mrb[0].mxu0
      %v942 = vadd.f32 0.0, %v941
      %943 = vmatprep.mubr.bf16.mxu0 0
      %944 = vmatmul.mubr.bf16.gmra.mrb[0].mxu0 %v703
      %v945 = vpop.f32.mrb[0].mxu0
      %v946 = vadd.f32 0.0, %v945
      %v947 = vpop.f32.mrb[0].mxu0
      %v948 = vadd.f32 0.0, %v947
      %v949 = vpop.f32.mrb[0].mxu0
      %v950 = vadd.f32 0.0, %v949
      %v951 = vpop.f32.mrb[0].mxu0
      %v952 = vadd.f32 0.0, %v951
      %953 = vmatprep.mubr.bf16.mxu0 0
      %954 = vmatmul.mubr.bf16.gmra.mrb[0].mxu0 %v706
      %v955 = vpop.f32.mrb[0].mxu0
      %v956 = vadd.f32 0.0, %v955
      %v957 = vpop.f32.mrb[0].mxu0
      %v958 = vadd.f32 0.0, %v957
      %v959 = vpop.f32.mrb[0].mxu0
      %v960 = vadd.f32 0.0, %v959
      %v961 = vpop.f32.mrb[0].mxu0
      %v962 = vadd.f32 0.0, %v961
      %963 = vmatprep.mubr.bf16.mxu0 0
      %964 = vmatmul.mubr.bf16.gmra.mrb[0].mxu0 %v709
      %v965 = vpop.f32.mrb[0].mxu0
      %v966 = vadd.f32 0.0, %v965
      %v967 = vpop.f32.mrb[0].mxu0
      %v968 = vadd.f32 0.0, %v967
      %v969 = vpop.f32.mrb[0].mxu0
      %v970 = vadd.f32 0.0, %v969
      %v971 = vpop.f32.mrb[0].mxu0
      %v972 = vadd.f32 0.0, %v971
      %973 = vmatprep.mubr.bf16.mxu0 0
      %974 = vmatmul.mubr.bf16.gmra.mrb[0].mxu0 %v712
      %v975 = vpop.f32.mrb[0].mxu0
      %v976 = vadd.f32 0.0, %v975
      %v977 = vpop.f32.mrb[0].mxu0
      %v978 = vadd.f32 0.0, %v977
      %v979 = vpop.f32.mrb[0].mxu0
      %v980 = vadd.f32 0.0, %v979
      %v981 = vpop.f32.mrb[0].mxu0
      %v982 = vadd.f32 0.0, %v981
      %983 = vmatprep.mubr.bf16.mxu0 0
      %984 = vmatmul.mubr.bf16.gmra.mrb[0].mxu0 %v715
      %v985 = vpop.f32.mrb[0].mxu0
      %v986 = vadd.f32 0.0, %v985
      %v987 = vpop.f32.mrb[0].mxu0
      %v988 = vadd.f32 0.0, %v987
      %v989 = vpop.f32.mrb[0].mxu0
      %v990 = vadd.f32 0.0, %v989
      %v991 = vpop.f32.mrb[0].mxu0
      %v992 = vadd.f32 0.0, %v991
      %993 = vmatprep.mubr.bf16.mxu0 0
      %994 = vmatmul.mubr.bf16.gmra.mrb[0].mxu0 %v718
      %v995 = vpop.f32.mrb[0].mxu0
      %v996 = vadd.f32 0.0, %v995
      %v997 = vpop.f32.mrb[0].mxu0
      %v998 = vadd.f32 0.0, %v997
      %v999 = vpop.f32.mrb[0].mxu0
      %v1000 = vadd.f32 0.0, %v999
      %v1001 = vpop.f32.mrb[0].mxu0
      %v1002 = vadd.f32 0.0, %v1001
      %1003 = vmatprep.mubr.bf16.mxu0 0
      %1004 = vmatmul.mubr.bf16.gmra.mrb[0].mxu0 %v721
      %v1005 = vpop.f32.mrb[0].mxu0
      %v1006 = vadd.f32 0.0, %v1005
      %v1007 = vpop.f32.mrb[0].mxu0
      %v1008 = vadd.f32 0.0, %v1007
      %v1009 = vpop.f32.mrb[0].mxu0
      %v1010 = vadd.f32 0.0, %v1009
      %v1011 = vpop.f32.mrb[0].mxu0
      %v1012 = vadd.f32 0.0, %v1011
      %1013 = vmatprep.mubr.bf16.mxu0 0
      %1014 = vmatmul.mubr.bf16.gmra.mrb[0].mxu0 %v724
      %v1015 = vpop.f32.mrb[0].mxu0
      %v1016 = vadd.f32 0.0, %v1015
      %v1017 = vpop.f32.mrb[0].mxu0
      %v1018 = vadd.f32 0.0, %v1017
      %v1019 = vpop.f32.mrb[0].mxu0
      %v1020 = vadd.f32 0.0, %v1019
      %v1021 = vpop.f32.mrb[0].mxu0
      %v1022 = vadd.f32 0.0, %v1021
      %1023 = vmatprep.mubr.bf16.mxu0 0
      %1024 = vmatmul.mubr.bf16.gmra.mrb[0].mxu0 %v727
      %v1025 = vpop.f32.mrb[0].mxu0
      %v1026 = vadd.f32 0.0, %v1025
      %v1027 = vpop.f32.mrb[0].mxu0
      %v1028 = vadd.f32 0.0, %v1027
      %v1029 = vpop.f32.mrb[0].mxu0
      %v1030 = vadd.f32 0.0, %v1029
      %v1031 = vpop.f32.mrb[0].mxu0
      %v1032 = vadd.f32 0.0, %v1031
      %1033 = vmatprep.mubr.bf16.mxu0 0
      %1034 = vmatmul.mubr.bf16.gmra.mrb[0].mxu0 %v730
      %v1035 = vpop.f32.mrb[0].mxu0
      %v1036 = vadd.f32 0.0, %v1035
      %v1037 = vpop.f32.mrb[0].mxu0
      %v1038 = vadd.f32 0.0, %v1037
      %v1039 = vpop.f32.mrb[0].mxu0
      %v1040 = vadd.f32 0.0, %v1039
      %v1041 = vpop.f32.mrb[0].mxu0
      %v1042 = vadd.f32 0.0, %v1041
      %1043 = vmatprep.mubr.bf16.mxu0 0
      %1044 = vmatmul.mubr.bf16.gmra.mrb[0].mxu0 %v733
      %v1045 = vpop.f32.mrb[0].mxu0
      %v1046 = vadd.f32 0.0, %v1045
      %v1047 = vpop.f32.mrb[0].mxu0
      %v1048 = vadd.f32 0.0, %v1047
      %v1049 = vpop.f32.mrb[0].mxu0
      %v1050 = vadd.f32 0.0, %v1049
      %v1051 = vpop.f32.mrb[0].mxu0
      %v1052 = vadd.f32 0.0, %v1051
      %1053 = vmatprep.mubr.bf16.mxu0 0
      %1054 = vmatmul.mubr.bf16.gmra.mrb[0].mxu0 %v736
      %v1055 = vpop.f32.mrb[0].mxu0
      %v1056 = vadd.f32 0.0, %v1055
      %v1057 = vpop.f32.mrb[0].mxu0
      %v1058 = vadd.f32 0.0, %v1057
      %v1059 = vpop.f32.mrb[0].mxu0
      %v1060 = vadd.f32 0.0, %v1059
      %v1061 = vpop.f32.mrb[0].mxu0
      %v1062 = vadd.f32 0.0, %v1061
      %1063 = vmatprep.mubr.bf16.mxu0 0
      %1064 = vmatmul.mubr.bf16.gmra.mrb[0].mxu0 %v739
      %v1065 = vpop.f32.mrb[0].mxu0
      %v1066 = vadd.f32 0.0, %v1065
      %v1067 = vpop.f32.mrb[0].mxu0
      %v1068 = vadd.f32 0.0, %v1067
      %v1069 = vpop.f32.mrb[0].mxu0
      %v1070 = vadd.f32 0.0, %v1069
      %v1071 = vpop.f32.mrb[0].mxu0
      %v1072 = vadd.f32 0.0, %v1071
      %1073 = vmatprep.mubr.bf16.mxu0 0
      %1074 = vmatmul.mubr.bf16.gmra.mrb[0].mxu0 %v742
      %v1075 = vpop.f32.mrb[0].mxu0
      %v1076 = vadd.f32 0.0, %v1075
      %v1077 = vpop.f32.mrb[0].mxu0
      %v1078 = vadd.f32 0.0, %v1077
      %v1079 = vpop.f32.mrb[0].mxu0
      %v1080 = vadd.f32 0.0, %v1079
      %v1081 = vpop.f32.mrb[0].mxu0
      %v1082 = vadd.f32 0.0, %v1081
      %1083 = vmatprep.mubr.bf16.mxu0 0
      %1084 = vmatmul.mubr.bf16.gmra.mrb[0].mxu0 %v745
      %v1085 = vpop.f32.mrb[0].mxu0
      %v1086 = vadd.f32 0.0, %v1085
      %v1087 = vpop.f32.mrb[0].mxu0
      %v1088 = vadd.f32 0.0, %v1087
      %v1089 = vpop.f32.mrb[0].mxu0
      %v1090 = vadd.f32 0.0, %v1089
      %v1091 = vpop.f32.mrb[0].mxu0
      %v1092 = vadd.f32 0.0, %v1091
      %1093 = vmatprep.mubr.bf16.mxu0 0
      %1094 = vmatmul.mubr.bf16.gmra.mrb[0].mxu0 %v748
      %v1095 = vpop.f32.mrb[0].mxu0
      %v1096 = vadd.f32 0.0, %v1095
      %v1097 = vpop.f32.mrb[0].mxu0
      %v1098 = vadd.f32 0.0, %v1097
      %v1099 = vpop.f32.mrb[0].mxu0
      %v1100 = vadd.f32 0.0, %v1099
      %v1101 = vpop.f32.mrb[0].mxu0
      %v1102 = vadd.f32 0.0, %v1101
      %1103 = vmatprep.mubr.bf16.mxu0 0
      %1104 = vmatmul.mubr.bf16.gmra.mrb[0].mxu0 %v751
      %v1105 = vpop.f32.mrb[0].mxu0
      %v1106 = vadd.f32 0.0, %v1105
      %v1107 = vpop.f32.mrb[0].mxu0
      %v1108 = vadd.f32 0.0, %v1107
      %v1109 = vpop.f32.mrb[0].mxu0
      %v1110 = vadd.f32 0.0, %v1109
      %v1111 = vpop.f32.mrb[0].mxu0
      %v1112 = vadd.f32 0.0, %v1111
      %1113 = vmatprep.mubr.bf16.mxu0 0
      %1114 = vmatmul.mubr.bf16.gmra.mrb[0].mxu0 %v754
      %v1115 = vpop.f32.mrb[0].mxu0
      %v1116 = vadd.f32 0.0, %v1115
      %v1117 = vpop.f32.mrb[0].mxu0
      %v1118 = vadd.f32 0.0, %v1117
      %v1119 = vpop.f32.mrb[0].mxu0
      %v1120 = vadd.f32 0.0, %v1119
      %v1121 = vpop.f32.mrb[0].mxu0
      %v1122 = vadd.f32 0.0, %v1121
      %1123 = vmatprep.mubr.bf16.mxu0 0
      %1124 = vmatmul.mubr.bf16.gmra.mrb[0].mxu0 %v757
      %v1125 = vpop.f32.mrb[0].mxu0
      %v1126 = vadd.f32 0.0, %v1125
      %v1127 = vpop.f32.mrb[0].mxu0
      %v1128 = vadd.f32 0.0, %v1127
      %v1129 = vpop.f32.mrb[0].mxu0
      %v1130 = vadd.f32 0.0, %v1129
      %v1131 = vpop.f32.mrb[0].mxu0
      %v1132 = vadd.f32 0.0, %v1131
      %1133 = vmatprep.mubr.bf16.mxu0 0
      %1134 = vmatmul.mubr.bf16.gmra.mrb[0].mxu0 %v760
      %v1135 = vpop.f32.mrb[0].mxu0
      %v1136 = vadd.f32 0.0, %v1135
      %v1137 = vpop.f32.mrb[0].mxu0
      %v1138 = vadd.f32 0.0, %v1137
      %v1139 = vpop.f32.mrb[0].mxu0
      %v1140 = vadd.f32 0.0, %v1139
      %v1141 = vpop.f32.mrb[0].mxu0
      %v1142 = vadd.f32 0.0, %v1141
      %1143 = vmatprep.mubr.bf16.mxu0 0
      %1144 = vmatmul.mubr.bf16.gmra.mrb[0].mxu0 %v763
      %v1145 = vpop.f32.mrb[0].mxu0
      %v1146 = vadd.f32 0.0, %v1145
      %v1147 = vpop.f32.mrb[0].mxu0
      %v1148 = vadd.f32 0.0, %v1147
      %v1149 = vpop.f32.mrb[0].mxu0
      %v1150 = vadd.f32 0.0, %v1149
      %v1151 = vpop.f32.mrb[0].mxu0
      %v1152 = vadd.f32 0.0, %v1151
      %1153 = vmatprep.mubr.bf16.mxu0 0
      %1154 = vmatmul.mubr.bf16.gmra.mrb[0].mxu0 %v766
      %v1155 = vpop.f32.mrb[0].mxu0
      %v1156 = vadd.f32 0.0, %v1155
      %v1157 = vpop.f32.mrb[0].mxu0
      %v1158 = vadd.f32 0.0, %v1157
      %v1159 = vpop.f32.mrb[0].mxu0
      %v1160 = vadd.f32 0.0, %v1159
      %v1161 = vpop.f32.mrb[0].mxu0
      %v1162 = vadd.f32 0.0, %v1161
      %1163 = vmatprep.mubr.bf16.mxu0 0
      %1164 = vmatmul.mubr.bf16.gmra.mrb[0].mxu0 %v769
      %v1165 = vpop.f32.mrb[0].mxu0
      %v1166 = vadd.f32 0.0, %v1165
      %v1167 = vpop.f32.mrb[0].mxu0
      %v1168 = vadd.f32 0.0, %v1167
      %v1169 = vpop.f32.mrb[0].mxu0
      %v1170 = vadd.f32 0.0, %v1169
      %v1171 = vpop.f32.mrb[0].mxu0
      %v1172 = vadd.f32 0.0, %v1171
      %1173 = vmatprep.mubr.bf16.mxu0 0
      %1174 = vmatmul.mubr.bf16.gmra.mrb[0].mxu0 %v772
      %v1175 = vpop.f32.mrb[0].mxu0
      %v1176 = vadd.f32 0.0, %v1175
      %v1177 = vpop.f32.mrb[0].mxu0
      %v1178 = vadd.f32 0.0, %v1177
      %v1179 = vpop.f32.mrb[0].mxu0
      %v1180 = vadd.f32 0.0, %v1179
      %v1181 = vpop.f32.mrb[0].mxu0
      %v1182 = vadd.f32 0.0, %v1181
      %1183 = vmatprep.mubr.bf16.mxu0 0
      %1184 = vmatmul.mubr.bf16.gmra.mrb[0].mxu0 %v775
      %v1185 = vpop.f32.mrb[0].mxu0
      %v1186 = vadd.f32 0.0, %v1185
      %v1187 = vpop.f32.mrb[0].mxu0
      %v1188 = vadd.f32 0.0, %v1187
      %v1189 = vpop.f32.mrb[0].mxu0
      %v1190 = vadd.f32 0.0, %v1189
      %v1191 = vpop.f32.mrb[0].mxu0
      %v1192 = vadd.f32 0.0, %v1191
      %1193 = vmatprep.mubr.bf16.mxu0 0
      %1194 = vmatmul.mubr.bf16.gmra.mrb[0].mxu0 %v778
      %v1195 = vpop.f32.mrb[0].mxu0
      %v1196 = vadd.f32 0.0, %v1195
      %v1197 = vpop.f32.mrb[0].mxu0
      %v1198 = vadd.f32 0.0, %v1197
      %v1199 = vpop.f32.mrb[0].mxu0
      %v1200 = vadd.f32 0.0, %v1199
      %v1201 = vpop.f32.mrb[0].mxu0
      %v1202 = vadd.f32 0.0, %v1201
      %1203 = vmatprep.mubr.bf16.mxu0 0
      %1204 = vmatmul.mubr.bf16.gmra.mrb[0].mxu0 %v781
      %v1205 = vpop.f32.mrb[0].mxu0
      %v1206 = vadd.f32 0.0, %v1205
      %v1207 = vpop.f32.mrb[0].mxu0
      %v1208 = vadd.f32 0.0, %v1207
      %v1209 = vpop.f32.mrb[0].mxu0
      %v1210 = vadd.f32 0.0, %v1209
      %v1211 = vpop.f32.mrb[0].mxu0
      %v1212 = vadd.f32 0.0, %v1211
      %1213 = vmatprep.mubr.bf16.mxu0 0
      %1214 = vmatmul.mubr.bf16.gmra.mrb[0].mxu0 %v784
      %v1215 = vpop.f32.mrb[0].mxu0
      %v1216 = vadd.f32 0.0, %v1215
      %v1217 = vpop.f32.mrb[0].mxu0
      %v1218 = vadd.f32 0.0, %v1217
      %v1219 = vpop.f32.mrb[0].mxu0
      %v1220 = vadd.f32 0.0, %v1219
      %v1221 = vpop.f32.mrb[0].mxu0
      %v1222 = vadd.f32 0.0, %v1221
      %1223 = vmatprep.mubr.bf16.mxu0 0
      %1224 = vmatmul.mubr.bf16.gmra.mrb[0].mxu0 %v787
      %v1225 = vpop.f32.mrb[0].mxu0
      %v1226 = vadd.f32 0.0, %v1225
      %v1227 = vpop.f32.mrb[0].mxu0
      %v1228 = vadd.f32 0.0, %v1227
      %v1229 = vpop.f32.mrb[0].mxu0
      %v1230 = vadd.f32 0.0, %v1229
      %v1231 = vpop.f32.mrb[0].mxu0
      %v1232 = vadd.f32 0.0, %v1231
      %1233 = vmatprep.mubr.bf16.mxu0 0
      %1234 = vmatmul.mubr.bf16.gmra.mrb[0].mxu0 %v790
      %v1235 = vpop.f32.mrb[0].mxu0
      %v1236 = vadd.f32 0.0, %v1235
      %v1237 = vpop.f32.mrb[0].mxu0
      %v1238 = vadd.f32 0.0, %v1237
      %v1239 = vpop.f32.mrb[0].mxu0
      %v1240 = vadd.f32 0.0, %v1239
      %v1241 = vpop.f32.mrb[0].mxu0
      %v1242 = vadd.f32 0.0, %v1241
      %1243 = vmatprep.mubr.bf16.mxu0 0
      %1244 = vmatmul.mubr.bf16.gmra.mrb[0].mxu0 %v793
      %v1245 = vpop.f32.mrb[0].mxu0
      %v1246 = vadd.f32 0.0, %v1245
      %v1247 = vpop.f32.mrb[0].mxu0
      %v1248 = vadd.f32 0.0, %v1247
      %v1249 = vpop.f32.mrb[0].mxu0
      %v1250 = vadd.f32 0.0, %v1249
      %v1251 = vpop.f32.mrb[0].mxu0
      %v1252 = vadd.f32 0.0, %v1251
      %1253 = vmatprep.mubr.bf16.mxu0 0
      %1254 = vmatmul.mubr.bf16.gmra.mrb[0].mxu0 %v796
      %v1255 = vpop.f32.mrb[0].mxu0
      %v1256 = vadd.f32 0.0, %v1255
      %v1257 = vpop.f32.mrb[0].mxu0
      %v1258 = vadd.f32 0.0, %v1257
      %v1259 = vpop.f32.mrb[0].mxu0
      %v1260 = vadd.f32 0.0, %v1259
      %v1261 = vpop.f32.mrb[0].mxu0
      %v1262 = vadd.f32 0.0, %v1261
      %1263 = vmatprep.mubr.bf16.mxu0 0
      %1264 = vmatmul.mubr.bf16.gmra.mrb[0].mxu0 %v799
      %v1265 = vpop.f32.mrb[0].mxu0
      %v1266 = vadd.f32 0.0, %v1265
      %v1267 = vpop.f32.mrb[0].mxu0
      %v1268 = vadd.f32 0.0, %v1267
      %v1269 = vpop.f32.mrb[0].mxu0
      %v1270 = vadd.f32 0.0, %v1269
      %v1271 = vpop.f32.mrb[0].mxu0
      %v1272 = vadd.f32 0.0, %v1271
      %1273 = vmatprep.mubr.bf16.mxu0 0
      %1274 = vmatmul.mubr.bf16.gmra.mrb[0].mxu0 %v802
      %v1275 = vpop.f32.mrb[0].mxu0
      %v1276 = vadd.f32 0.0, %v1275
      %v1277 = vpop.f32.mrb[0].mxu0
      %v1278 = vadd.f32 0.0, %v1277
      %v1279 = vpop.f32.mrb[0].mxu0
      %v1280 = vadd.f32 0.0, %v1279
      %v1281 = vpop.f32.mrb[0].mxu0
      %v1282 = vadd.f32 0.0, %v1281
      %1283 = vmatprep.mubr.bf16.mxu0 0
      %1284 = vmatmul.mubr.bf16.gmra.mrb[0].mxu0 %v805
      %v1285 = vpop.f32.mrb[0].mxu0
      %v1286 = vadd.f32 0.0, %v1285
      %v1287 = vpop.f32.mrb[0].mxu0
      %v1288 = vadd.f32 0.0, %v1287
      %v1289 = vpop.f32.mrb[0].mxu0
      %v1290 = vadd.f32 0.0, %v1289
      %v1291 = vpop.f32.mrb[0].mxu0
      %v1292 = vadd.f32 0.0, %v1291
      %1293 = vmatprep.mubr.bf16.mxu0 0
      %1294 = vmatmul.mubr.bf16.gmra.mrb[0].mxu0 %v808
      %v1295 = vpop.f32.mrb[0].mxu0
      %v1296 = vadd.f32 0.0, %v1295
      %v1297 = vpop.f32.mrb[0].mxu0
      %v1298 = vadd.f32 0.0, %v1297
      %v1299 = vpop.f32.mrb[0].mxu0
      %v1300 = vadd.f32 0.0, %v1299
      %v1301 = vpop.f32.mrb[0].mxu0
      %v1302 = vadd.f32 0.0, %v1301
      %1303 = vmatprep.mubr.bf16.mxu0 0
      %1304 = vmatmul.mubr.bf16.gmra.mrb[0].mxu0 %v811
      %v1305 = vpop.f32.mrb[0].mxu0
      %v1306 = vadd.f32 0.0, %v1305
      %v1307 = vpop.f32.mrb[0].mxu0
      %v1308 = vadd.f32 0.0, %v1307
      %v1309 = vpop.f32.mrb[0].mxu0
      %v1310 = vadd.f32 0.0, %v1309
      %v1311 = vpop.f32.mrb[0].mxu0
      %v1312 = vadd.f32 0.0, %v1311
      %1313 = vmatprep.mubr.bf16.mxu0 0
      %1314 = vmatmul.mubr.bf16.gmra.mrb[0].mxu0 %v814
      %v1315 = vpop.f32.mrb[0].mxu0
      %v1316 = vadd.f32 0.0, %v1315
      %v1317 = vpop.f32.mrb[0].mxu0
      %v1318 = vadd.f32 0.0, %v1317
      %v1319 = vpop.f32.mrb[0].mxu0
      %v1320 = vadd.f32 0.0, %v1319
      %v1321 = vpop.f32.mrb[0].mxu0
      %v1322 = vadd.f32 0.0, %v1321
      %1323 = vmatprep.mubr.bf16.mxu0 0
      %1324 = vmatmul.mubr.bf16.gmra.mrb[0].mxu0 %v817
      %v1325 = vpop.f32.mrb[0].mxu0
      %v1326 = vadd.f32 0.0, %v1325
      %v1327 = vpop.f32.mrb[0].mxu0
      %v1328 = vadd.f32 0.0, %v1327
      %v1329 = vpop.f32.mrb[0].mxu0
      %v1330 = vadd.f32 0.0, %v1329
      %v1331 = vpop.f32.mrb[0].mxu0
      %v1332 = vadd.f32 0.0, %v1331
      %1333 = vmatprep.mubr.bf16.mxu0 0
      %1334 = vmatmul.mubr.bf16.gmra.mrb[0].mxu0 %v820
      %v1335 = vpop.f32.mrb[0].mxu0
      %v1336 = vadd.f32 0.0, %v1335
      %v1337 = vpop.f32.mrb[0].mxu0
      %v1338 = vadd.f32 0.0, %v1337
      %v1339 = vpop.f32.mrb[0].mxu0
      %v1340 = vadd.f32 0.0, %v1339
      %v1341 = vpop.f32.mrb[0].mxu0
      %v1342 = vadd.f32 0.0, %v1341
      %1343 = vmatprep.mubr.bf16.mxu0 0
      %1344 = vmatmul.mubr.bf16.gmra.mrb[0].mxu0 %v823
      %v1345 = vpop.f32.mrb[0].mxu0
      %v1346 = vadd.f32 0.0, %v1345
      %v1347 = vpop.f32.mrb[0].mxu0
      %v1348 = vadd.f32 0.0, %v1347
      %v1349 = vpop.f32.mrb[0].mxu0
      %v1350 = vadd.f32 0.0, %v1349
      %v1351 = vpop.f32.mrb[0].mxu0
      %v1352 = vadd.f32 0.0, %v1351
      %1353 = vmatprep.mubr.bf16.mxu0 0
      %1354 = vmatmul.mubr.bf16.gmra.mrb[0].mxu0 %v826
      %v1355 = vpop.f32.mrb[0].mxu0
      %v1356 = vadd.f32 0.0, %v1355
      %v1357 = vpop.f32.mrb[0].mxu0
      %v1358 = vadd.f32 0.0, %v1357
      %v1359 = vpop.f32.mrb[0].mxu0
      %v1360 = vadd.f32 0.0, %v1359
      %v1361 = vpop.f32.mrb[0].mxu0
      %v1362 = vadd.f32 0.0, %v1361
      %1363 = vmatprep.mubr.bf16.mxu0 0
      %1364 = vmatmul.mubr.bf16.gmra.mrb[0].mxu0 %v829
      %v1365 = vpop.f32.mrb[0].mxu0
      %v1366 = vadd.f32 0.0, %v1365
      %v1367 = vpop.f32.mrb[0].mxu0
      %v1368 = vadd.f32 0.0, %v1367
      %v1369 = vpop.f32.mrb[0].mxu0
      %v1370 = vadd.f32 0.0, %v1369
      %v1371 = vpop.f32.mrb[0].mxu0
      %v1372 = vadd.f32 0.0, %v1371
      %1373 = vmatprep.mubr.bf16.mxu0 0
      %1374 = vmatmul.mubr.bf16.gmra.mrb[0].mxu0 %v832
      %v1375 = vpop.f32.mrb[0].mxu0
      %v1376 = vadd.f32 0.0, %v1375
      %v1377 = vpop.f32.mrb[0].mxu0
      %v1378 = vadd.f32 0.0, %v1377
      %v1379 = vpop.f32.mrb[0].mxu0
      %v1380 = vadd.f32 0.0, %v1379
      %v1381 = vpop.f32.mrb[0].mxu0
      %v1382 = vadd.f32 0.0, %v1381
      %1383 = vmatprep.mubr.bf16.mxu0 0
      %1384 = vmatmul.mubr.bf16.gmra.mrb[0].mxu0 %v835
      %v1385 = vpop.f32.mrb[0].mxu0
      %v1386 = vadd.f32 0.0, %v1385
      %v1387 = vpop.f32.mrb[0].mxu0
      %v1388 = vadd.f32 0.0, %v1387
      %v1389 = vpop.f32.mrb[0].mxu0
      %v1390 = vadd.f32 0.0, %v1389
      %v1391 = vpop.f32.mrb[0].mxu0
      %v1392 = vadd.f32 0.0, %v1391
      %1393 = vmatprep.mubr.bf16.mxu0 0
      %1394 = vmatmul.mubr.bf16.gmra.mrb[0].mxu0 %v838
      %v1395 = vpop.f32.mrb[0].mxu0
      %v1396 = vadd.f32 0.0, %v1395
      %v1397 = vpop.f32.mrb[0].mxu0
      %v1398 = vadd.f32 0.0, %v1397
      %v1399 = vpop.f32.mrb[0].mxu0
      %v1400 = vadd.f32 0.0, %v1399
      %v1401 = vpop.f32.mrb[0].mxu0
      %v1402 = vadd.f32 0.0, %v1401
      %1403 = vmatprep.mubr.bf16.mxu0 0
      %1404 = vmatmul.mubr.bf16.gmra.mrb[0].mxu0 %v841
      %v1405 = vpop.f32.mrb[0].mxu0
      %v1406 = vadd.f32 0.0, %v1405
      %v1407 = vpop.f32.mrb[0].mxu0
      %v1408 = vadd.f32 0.0, %v1407
      %v1409 = vpop.f32.mrb[0].mxu0
      %v1410 = vadd.f32 0.0, %v1409
      %v1411 = vpop.f32.mrb[0].mxu0
      %v1412 = vadd.f32 0.0, %v1411
      %1413 = vmatprep.mubr.bf16.mxu0 0
      %1414 = vmatmul.mubr.bf16.gmra.mrb[0].mxu0 %v844
      %v1415 = vpop.f32.mrb[0].mxu0
      %v1416 = vadd.f32 0.0, %v1415
      %v1417 = vpop.f32.mrb[0].mxu0
      %v1418 = vadd.f32 0.0, %v1417
      %v1419 = vpop.f32.mrb[0].mxu0
      %v1420 = vadd.f32 0.0, %v1419
      %v1421 = vpop.f32.mrb[0].mxu0
      %v1422 = vadd.f32 0.0, %v1421
      %1423 = vmatprep.mubr.bf16.mxu0 0
      %1424 = vmatmul.mubr.bf16.gmra.mrb[0].mxu0 %v847
      %v1425 = vpop.f32.mrb[0].mxu0
      %v1426 = vadd.f32 0.0, %v1425
      %v1427 = vpop.f32.mrb[0].mxu0
      %v1428 = vadd.f32 0.0, %v1427
      %v1429 = vpop.f32.mrb[0].mxu0
      %v1430 = vadd.f32 0.0, %v1429
      %v1431 = vpop.f32.mrb[0].mxu0
      %v1432 = vadd.f32 0.0, %v1431
      %1433 = vmatprep.mubr.bf16.mxu0 0
      %1434 = vmatmul.mubr.bf16.gmra.mrb[0].mxu0 %v850
      %v1435 = vpop.f32.mrb[0].mxu0
      %v1436 = vadd.f32 0.0, %v1435
      %v1437 = vpop.f32.mrb[0].mxu0
      %v1438 = vadd.f32 0.0, %v1437
      %v1439 = vpop.f32.mrb[0].mxu0
      %v1440 = vadd.f32 0.0, %v1439
      %v1441 = vpop.f32.mrb[0].mxu0
      %v1442 = vadd.f32 0.0, %v1441
      %1443 = vmatprep.mubr.bf16.mxu0 0
      %1444 = vmatmul.mubr.bf16.gmra.mrb[0].mxu0 %v853
      %v1445 = vpop.f32.mrb[0].mxu0
      %v1446 = vadd.f32 0.0, %v1445
      %v1447 = vpop.f32.mrb[0].mxu0
      %v1448 = vadd.f32 0.0, %v1447
      %v1449 = vpop.f32.mrb[0].mxu0
      %v1450 = vadd.f32 0.0, %v1449
      %v1451 = vpop.f32.mrb[0].mxu0
      %v1452 = vadd.f32 0.0, %v1451
      %1453 = vmatprep.mubr.bf16.mxu0 0
      %1454 = vmatmul.mubr.bf16.gmra.mrb[0].mxu0 %v856
      %v1455 = vpop.f32.mrb[0].mxu0
      %v1456 = vadd.f32 0.0, %v1455
      %v1457 = vpop.f32.mrb[0].mxu0
      %v1458 = vadd.f32 0.0, %v1457
      %v1459 = vpop.f32.mrb[0].mxu0
      %v1460 = vadd.f32 0.0, %v1459
      %v1461 = vpop.f32.mrb[0].mxu0
      %v1462 = vadd.f32 0.0, %v1461
      %1463 = vmatprep.mubr.bf16.mxu0 0
      %1464 = vmatmul.mubr.bf16.gmra.mrb[0].mxu0 %v859
      %v1465 = vpop.f32.mrb[0].mxu0
      %v1466 = vadd.f32 0.0, %v1465
      %v1467 = vpop.f32.mrb[0].mxu0
      %v1468 = vadd.f32 0.0, %v1467
      %v1469 = vpop.f32.mrb[0].mxu0
      %v1470 = vadd.f32 0.0, %v1469
      %v1471 = vpop.f32.mrb[0].mxu0
      %v1472 = vadd.f32 0.0, %v1471
      %1473 = vmatprep.mubr.bf16.mxu0 0
      %1474 = vmatmul.mubr.bf16.gmra.mrb[0].mxu0 %v862
      %v1475 = vpop.f32.mrb[0].mxu0
      %v1476 = vadd.f32 0.0, %v1475
      %v1477 = vpop.f32.mrb[0].mxu0
      %v1478 = vadd.f32 0.0, %v1477
      %v1479 = vpop.f32.mrb[0].mxu0
      %v1480 = vadd.f32 0.0, %v1479
      %v1481 = vpop.f32.mrb[0].mxu0
      %v1482 = vadd.f32 0.0, %v1481
      %1483 = vmatprep.mubr.bf16.mxu0 0
      %1484 = vmatmul.mubr.bf16.gmra.mrb[0].mxu0 %v865
      %v1485 = vpop.f32.mrb[0].mxu0
      %v1486 = vadd.f32 0.0, %v1485
      %v1487 = vpop.f32.mrb[0].mxu0
      %v1488 = vadd.f32 0.0, %v1487
      %v1489 = vpop.f32.mrb[0].mxu0
      %v1490 = vadd.f32 0.0, %v1489
      %v1491 = vpop.f32.mrb[0].mxu0
      %v1492 = vadd.f32 0.0, %v1491
      %1493 = vmatprep.mubr.bf16.mxu0 0
      %1494 = vmatmul.mubr.bf16.gmra.mrb[0].mxu0 %v868
      %v1495 = vpop.f32.mrb[0].mxu0
      %v1496 = vadd.f32 0.0, %v1495
      %v1497 = vpop.f32.mrb[0].mxu0
      %v1498 = vadd.f32 0.0, %v1497
      %v1499 = vpop.f32.mrb[0].mxu0
      %v1500 = vadd.f32 0.0, %v1499
      %v1501 = vpop.f32.mrb[0].mxu0
      %v1502 = vadd.f32 0.0, %v1501
      %1503 = vmatprep.mubr.bf16.mxu0 0
      %1504 = vmatmul.mubr.bf16.gmra.mrb[0].mxu0 %v871
      %v1505 = vpop.f32.mrb[0].mxu0
      %v1506 = vadd.f32 0.0, %v1505
      %v1507 = vpop.f32.mrb[0].mxu0
      %v1508 = vadd.f32 0.0, %v1507
      %v1509 = vpop.f32.mrb[0].mxu0
      %v1510 = vadd.f32 0.0, %v1509
      %v1511 = vpop.f32.mrb[0].mxu0
      %v1512 = vadd.f32 0.0, %v1511
      %1513 = vmatprep.mubr.bf16.mxu0 0
      %1514 = vmatmul.mubr.bf16.gmra.mrb[0].mxu0 %v874
      %v1515 = vpop.f32.mrb[0].mxu0
      %v1516 = vadd.f32 0.0, %v1515
      %v1517 = vpop.f32.mrb[0].mxu0
      %v1518 = vadd.f32 0.0, %v1517
      %v1519 = vpop.f32.mrb[0].mxu0
      %v1520 = vadd.f32 0.0, %v1519
      %v1521 = vpop.f32.mrb[0].mxu0
      %v1522 = vadd.f32 0.0, %v1521
      %1523 = vmatprep.mubr.bf16.mxu0 0
      %1524 = vmatmul.mubr.bf16.gmra.mrb[0].mxu0 %v877
      %v1525 = vpop.f32.mrb[0].mxu0
      %v1526 = vadd.f32 0.0, %v1525
      %v1527 = vpop.f32.mrb[0].mxu0
      %v1528 = vadd.f32 0.0, %v1527
      %v1529 = vpop.f32.mrb[0].mxu0
      %v1530 = vadd.f32 0.0, %v1529
      %v1531 = vpop.f32.mrb[0].mxu0
      %v1532 = vadd.f32 0.0, %v1531
      %1533 = vmatprep.mubr.bf16.mxu0 0
      %1534 = vmatmul.mubr.bf16.gmra.mrb[0].mxu0 %v880
      %v1535 = vpop.f32.mrb[0].mxu0
      %v1536 = vadd.f32 0.0, %v1535
      %v1537 = vpop.f32.mrb[0].mxu0
      %v1538 = vadd.f32 0.0, %v1537
      %v1539 = vpop.f32.mrb[0].mxu0
      %v1540 = vadd.f32 0.0, %v1539
      %v1541 = vpop.f32.mrb[0].mxu0
      %v1542 = vadd.f32 0.0, %v1541
      %1543 = vmatprep.mubr.bf16.mxu0 0
      %1544 = vmatmul.mubr.bf16.gmra.mrb[0].mxu0 %v883
      %v1545 = vpop.f32.mrb[0].mxu0
      %v1546 = vadd.f32 0.0, %v1545
      %v1547 = vpop.f32.mrb[0].mxu0
      %v1548 = vadd.f32 0.0, %v1547
      %v1549 = vpop.f32.mrb[0].mxu0
      %v1550 = vadd.f32 0.0, %v1549
      %v1551 = vpop.f32.mrb[0].mxu0
      %v1552 = vadd.f32 0.0, %v1551
      %1553 = vmatprep.mubr.bf16.mxu0 0
      %1554 = vmatmul.mubr.bf16.gmra.mrb[0].mxu0 %v886
      %v1555 = vpop.f32.mrb[0].mxu0
      %v1556 = vadd.f32 0.0, %v1555
      %v1557 = vpop.f32.mrb[0].mxu0
      %v1558 = vadd.f32 0.0, %v1557
      %v1559 = vpop.f32.mrb[0].mxu0
      %v1560 = vadd.f32 0.0, %v1559
      %v1561 = vpop.f32.mrb[0].mxu0
      %v1562 = vadd.f32 0.0, %v1561
      %1563 = vmatprep.mubr.bf16.mxu0 0
      %1564 = vmatmul.mubr.bf16.gmra.mrb[0].mxu0 %v889
      %v1565 = vpop.f32.mrb[0].mxu0
      %v1566 = vadd.f32 0.0, %v1565
      %v1567 = vpop.f32.mrb[0].mxu0
      %v1568 = vadd.f32 0.0, %v1567
      %v1569 = vpop.f32.mrb[0].mxu0
      %v1570 = vadd.f32 0.0, %v1569
      %v1571 = vpop.f32.mrb[0].mxu0
      %v1572 = vadd.f32 0.0, %v1571
      %1573 = vdwg.mxu0
      %1574 = vmatprep.subr.bf16.mxu0 0
      %1575 = vmatpush1.bf16.msra.mxu0 %v899
      %1576 = vmatprep.subr.bf16.mxu0 0
      %1577 = vmatpush1.bf16.msra.mxu0 0
      %1578 = vmatprep.subr.bf16.mxu0 0
      %1579 = vmatpush1.bf16.msra.mxu0 0
      %1580 = vmatprep.subr.bf16.mxu0 0
      %1581 = vmatpush1.bf16.msra.mxu0 0
      %1582 = vmatprep.subr.bf16.mxu0 0
      %1583 = vmatpush1.bf16.msra.mxu0 0
      %1584 = vmatprep.subr.bf16.mxu0 0
      %1585 = vmatpush1.bf16.msra.mxu0 0
      %1586 = vmatprep.subr.bf16.mxu0 0
      %1587 = vmatpush1.bf16.msra.mxu0 0
      %1588 = vmatprep.subr.bf16.mxu0 0
      %1589 = vmatpush1.bf16.msra.mxu0 0
      %1590 = vmatprep.subr.bf16.mxu0 0
      %1591 = vmatpush1.bf16.msra.mxu0 0
      %1592 = vmatprep.subr.bf16.mxu0 0
      %1593 = vmatpush1.bf16.msra.mxu0 0
      %1594 = vmatprep.subr.bf16.mxu0 0
      %1595 = vmatpush1.bf16.msra.mxu0 0
      %1596 = vmatprep.subr.bf16.mxu0 0
      %1597 = vmatpush1.bf16.msra.mxu0 0
      %1598 = vmatprep.subr.bf16.mxu0 0
      %1599 = vmatpush1.bf16.msra.mxu0 0
      %1600 = vmatprep.subr.bf16.mxu0 0
      %1601 = vmatpush1.bf16.msra.mxu0 0
      %1602 = vmatprep.subr.bf16.mxu0 0
      %1603 = vmatpush1.bf16.msra.mxu0 0
      %1604 = vmatprep.subr.bf16.mxu0 0
      %1605 = vmatpush1.bf16.msra.mxu0 0
      %1606 = vmatprep.mubr.bf16.mxu0 0
      %1607 = vmatmul.mubr.bf16.gmra.mrb[0].mxu0 %v700
      %v1608 = vpop.f32.mrb[0].mxu0
      %v1609 = vadd.f32 0.0, %v1608
      %v1610 = vpop.f32.mrb[0].mxu0
      %v1611 = vpop.f32.mrb[0].mxu0
      %v1612 = vadd.f32 0.0, %v1611
      %v1613 = vpop.f32.mrb[0].mxu0
      %1614 = vmatprep.mubr.bf16.mxu0 0
      %1615 = vmatmul.mubr.bf16.gmra.mrb[0].mxu0 %v703
      %v1616 = vpop.f32.mrb[0].mxu0
      %v1617 = vadd.f32 0.0, %v1616
      %v1618 = vpop.f32.mrb[0].mxu0
      %v1619 = vpop.f32.mrb[0].mxu0
      %v1620 = vadd.f32 0.0, %v1619
      %v1621 = vpop.f32.mrb[0].mxu0
      %1622 = vmatprep.mubr.bf16.mxu0 0
      %1623 = vmatmul.mubr.bf16.gmra.mrb[0].mxu0 %v706
      %v1624 = vpop.f32.mrb[0].mxu0
      %v1625 = vadd.f32 0.0, %v1624
      %v1626 = vpop.f32.mrb[0].mxu0
      %v1627 = vpop.f32.mrb[0].mxu0
      %v1628 = vadd.f32 0.0, %v1627
      %v1629 = vpop.f32.mrb[0].mxu0
      %1630 = vmatprep.mubr.bf16.mxu0 0
      %1631 = vmatmul.mubr.bf16.gmra.mrb[0].mxu0 %v709
      %v1632 = vpop.f32.mrb[0].mxu0
      %v1633 = vadd.f32 0.0, %v1632
      %v1634 = vpop.f32.mrb[0].mxu0
      %v1635 = vpop.f32.mrb[0].mxu0
      %v1636 = vadd.f32 0.0, %v1635
      %v1637 = vpop.f32.mrb[0].mxu0
      %1638 = vmatprep.mubr.bf16.mxu0 0
      %1639 = vmatmul.mubr.bf16.gmra.mrb[0].mxu0 %v712
      %v1640 = vpop.f32.mrb[0].mxu0
      %v1641 = vadd.f32 0.0, %v1640
      %v1642 = vpop.f32.mrb[0].mxu0
      %v1643 = vpop.f32.mrb[0].mxu0
      %v1644 = vadd.f32 0.0, %v1643
      %v1645 = vpop.f32.mrb[0].mxu0
      %1646 = vmatprep.mubr.bf16.mxu0 0
      %1647 = vmatmul.mubr.bf16.gmra.mrb[0].mxu0 %v715
      %v1648 = vpop.f32.mrb[0].mxu0
      %v1649 = vadd.f32 0.0, %v1648
      %v1650 = vpop.f32.mrb[0].mxu0
      %v1651 = vpop.f32.mrb[0].mxu0
      %v1652 = vadd.f32 0.0, %v1651
      %v1653 = vpop.f32.mrb[0].mxu0
      %1654 = vmatprep.mubr.bf16.mxu0 0
      %1655 = vmatmul.mubr.bf16.gmra.mrb[0].mxu0 %v718
      %v1656 = vpop.f32.mrb[0].mxu0
      %v1657 = vadd.f32 0.0, %v1656
      %v1658 = vpop.f32.mrb[0].mxu0
      %v1659 = vpop.f32.mrb[0].mxu0
      %v1660 = vadd.f32 0.0, %v1659
      %v1661 = vpop.f32.mrb[0].mxu0
      %1662 = vmatprep.mubr.bf16.mxu0 0
      %1663 = vmatmul.mubr.bf16.gmra.mrb[0].mxu0 %v721
      %v1664 = vpop.f32.mrb[0].mxu0
      %v1665 = vadd.f32 0.0, %v1664
      %v1666 = vpop.f32.mrb[0].mxu0
      %v1667 = vpop.f32.mrb[0].mxu0
      %v1668 = vadd.f32 0.0, %v1667
      %v1669 = vpop.f32.mrb[0].mxu0
      %1670 = vmatprep.mubr.bf16.mxu0 0
      %1671 = vmatmul.mubr.bf16.gmra.mrb[0].mxu0 %v724
      %v1672 = vpop.f32.mrb[0].mxu0
      %v1673 = vadd.f32 0.0, %v1672
      %v1674 = vpop.f32.mrb[0].mxu0
      %v1675 = vpop.f32.mrb[0].mxu0
      %v1676 = vadd.f32 0.0, %v1675
      %v1677 = vpop.f32.mrb[0].mxu0
      %1678 = vmatprep.mubr.bf16.mxu0 0
      %1679 = vmatmul.mubr.bf16.gmra.mrb[0].mxu0 %v727
      %v1680 = vpop.f32.mrb[0].mxu0
      %v1681 = vadd.f32 0.0, %v1680
      %v1682 = vpop.f32.mrb[0].mxu0
      %v1683 = vpop.f32.mrb[0].mxu0
      %v1684 = vadd.f32 0.0, %v1683
      %v1685 = vpop.f32.mrb[0].mxu0
      %1686 = vmatprep.mubr.bf16.mxu0 0
      %1687 = vmatmul.mubr.bf16.gmra.mrb[0].mxu0 %v730
      %v1688 = vpop.f32.mrb[0].mxu0
      %v1689 = vadd.f32 0.0, %v1688
      %v1690 = vpop.f32.mrb[0].mxu0
      %v1691 = vpop.f32.mrb[0].mxu0
      %v1692 = vadd.f32 0.0, %v1691
      %v1693 = vpop.f32.mrb[0].mxu0
      %1694 = vmatprep.mubr.bf16.mxu0 0
      %1695 = vmatmul.mubr.bf16.gmra.mrb[0].mxu0 %v733
      %v1696 = vpop.f32.mrb[0].mxu0
      %v1697 = vadd.f32 0.0, %v1696
      %v1698 = vpop.f32.mrb[0].mxu0
      %v1699 = vpop.f32.mrb[0].mxu0
      %v1700 = vadd.f32 0.0, %v1699
      %v1701 = vpop.f32.mrb[0].mxu0
      %1702 = vmatprep.mubr.bf16.mxu0 0
      %1703 = vmatmul.mubr.bf16.gmra.mrb[0].mxu0 %v736
      %v1704 = vpop.f32.mrb[0].mxu0
      %v1705 = vadd.f32 0.0, %v1704
      %v1706 = vpop.f32.mrb[0].mxu0
      %v1707 = vpop.f32.mrb[0].mxu0
      %v1708 = vadd.f32 0.0, %v1707
      %v1709 = vpop.f32.mrb[0].mxu0
      %1710 = vmatprep.mubr.bf16.mxu0 0
      %1711 = vmatmul.mubr.bf16.gmra.mrb[0].mxu0 %v739
      %v1712 = vpop.f32.mrb[0].mxu0
      %v1713 = vadd.f32 0.0, %v1712
      %v1714 = vpop.f32.mrb[0].mxu0
      %v1715 = vpop.f32.mrb[0].mxu0
      %v1716 = vadd.f32 0.0, %v1715
      %v1717 = vpop.f32.mrb[0].mxu0
      %1718 = vmatprep.mubr.bf16.mxu0 0
      %1719 = vmatmul.mubr.bf16.gmra.mrb[0].mxu0 %v742
      %v1720 = vpop.f32.mrb[0].mxu0
      %v1721 = vadd.f32 0.0, %v1720
      %v1722 = vpop.f32.mrb[0].mxu0
      %v1723 = vpop.f32.mrb[0].mxu0
      %v1724 = vadd.f32 0.0, %v1723
      %v1725 = vpop.f32.mrb[0].mxu0
      %1726 = vmatprep.mubr.bf16.mxu0 0
      %1727 = vmatmul.mubr.bf16.gmra.mrb[0].mxu0 %v745
      %v1728 = vpop.f32.mrb[0].mxu0
      %v1729 = vadd.f32 0.0, %v1728
      %v1730 = vpop.f32.mrb[0].mxu0
      %v1731 = vpop.f32.mrb[0].mxu0
      %v1732 = vadd.f32 0.0, %v1731
      %v1733 = vpop.f32.mrb[0].mxu0
      %1734 = vmatprep.mubr.bf16.mxu0 0
      %1735 = vmatmul.mubr.bf16.gmra.mrb[0].mxu0 %v748
      %v1736 = vpop.f32.mrb[0].mxu0
      %v1737 = vadd.f32 0.0, %v1736
      %v1738 = vpop.f32.mrb[0].mxu0
      %v1739 = vpop.f32.mrb[0].mxu0
      %v1740 = vadd.f32 0.0, %v1739
      %v1741 = vpop.f32.mrb[0].mxu0
      %1742 = vmatprep.mubr.bf16.mxu0 0
      %1743 = vmatmul.mubr.bf16.gmra.mrb[0].mxu0 %v751
      %v1744 = vpop.f32.mrb[0].mxu0
      %v1745 = vadd.f32 0.0, %v1744
      %v1746 = vpop.f32.mrb[0].mxu0
      %v1747 = vpop.f32.mrb[0].mxu0
      %v1748 = vadd.f32 0.0, %v1747
      %v1749 = vpop.f32.mrb[0].mxu0
      %1750 = vmatprep.mubr.bf16.mxu0 0
      %1751 = vmatmul.mubr.bf16.gmra.mrb[0].mxu0 %v754
      %v1752 = vpop.f32.mrb[0].mxu0
      %v1753 = vadd.f32 0.0, %v1752
      %v1754 = vpop.f32.mrb[0].mxu0
      %v1755 = vpop.f32.mrb[0].mxu0
      %v1756 = vadd.f32 0.0, %v1755
      %v1757 = vpop.f32.mrb[0].mxu0
      %1758 = vmatprep.mubr.bf16.mxu0 0
      %1759 = vmatmul.mubr.bf16.gmra.mrb[0].mxu0 %v757
      %v1760 = vpop.f32.mrb[0].mxu0
      %v1761 = vadd.f32 0.0, %v1760
      %v1762 = vpop.f32.mrb[0].mxu0
      %v1763 = vpop.f32.mrb[0].mxu0
      %v1764 = vadd.f32 0.0, %v1763
      %v1765 = vpop.f32.mrb[0].mxu0
      %1766 = vmatprep.mubr.bf16.mxu0 0
      %1767 = vmatmul.mubr.bf16.gmra.mrb[0].mxu0 %v760
      %v1768 = vpop.f32.mrb[0].mxu0
      %v1769 = vadd.f32 0.0, %v1768
      %v1770 = vpop.f32.mrb[0].mxu0
      %v1771 = vpop.f32.mrb[0].mxu0
      %v1772 = vadd.f32 0.0, %v1771
      %v1773 = vpop.f32.mrb[0].mxu0
      %1774 = vmatprep.mubr.bf16.mxu0 0
      %1775 = vmatmul.mubr.bf16.gmra.mrb[0].mxu0 %v763
      %v1776 = vpop.f32.mrb[0].mxu0
      %v1777 = vadd.f32 0.0, %v1776
      %v1778 = vpop.f32.mrb[0].mxu0
      %v1779 = vpop.f32.mrb[0].mxu0
      %v1780 = vadd.f32 0.0, %v1779
      %v1781 = vpop.f32.mrb[0].mxu0
      %1782 = vmatprep.mubr.bf16.mxu0 0
      %1783 = vmatmul.mubr.bf16.gmra.mrb[0].mxu0 %v766
      %v1784 = vpop.f32.mrb[0].mxu0
      %v1785 = vadd.f32 0.0, %v1784
      %v1786 = vpop.f32.mrb[0].mxu0
      %v1787 = vpop.f32.mrb[0].mxu0
      %v1788 = vadd.f32 0.0, %v1787
      %v1789 = vpop.f32.mrb[0].mxu0
      %1790 = vmatprep.mubr.bf16.mxu0 0
      %1791 = vmatmul.mubr.bf16.gmra.mrb[0].mxu0 %v769
      %v1792 = vpop.f32.mrb[0].mxu0
      %v1793 = vadd.f32 0.0, %v1792
      %v1794 = vpop.f32.mrb[0].mxu0
      %v1795 = vpop.f32.mrb[0].mxu0
      %v1796 = vadd.f32 0.0, %v1795
      %v1797 = vpop.f32.mrb[0].mxu0
      %1798 = vmatprep.mubr.bf16.mxu0 0
      %1799 = vmatmul.mubr.bf16.gmra.mrb[0].mxu0 %v772
      %v1800 = vpop.f32.mrb[0].mxu0
      %v1801 = vadd.f32 0.0, %v1800
      %v1802 = vpop.f32.mrb[0].mxu0
      %v1803 = vpop.f32.mrb[0].mxu0
      %v1804 = vadd.f32 0.0, %v1803
      %v1805 = vpop.f32.mrb[0].mxu0
      %1806 = vmatprep.mubr.bf16.mxu0 0
      %1807 = vmatmul.mubr.bf16.gmra.mrb[0].mxu0 %v775
      %v1808 = vpop.f32.mrb[0].mxu0
      %v1809 = vadd.f32 0.0, %v1808
      %v1810 = vpop.f32.mrb[0].mxu0
      %v1811 = vpop.f32.mrb[0].mxu0
      %v1812 = vadd.f32 0.0, %v1811
      %v1813 = vpop.f32.mrb[0].mxu0
      %1814 = vmatprep.mubr.bf16.mxu0 0
      %1815 = vmatmul.mubr.bf16.gmra.mrb[0].mxu0 %v778
      %v1816 = vpop.f32.mrb[0].mxu0
      %v1817 = vadd.f32 0.0, %v1816
      %v1818 = vpop.f32.mrb[0].mxu0
      %v1819 = vpop.f32.mrb[0].mxu0
      %v1820 = vadd.f32 0.0, %v1819
      %v1821 = vpop.f32.mrb[0].mxu0
      %1822 = vmatprep.mubr.bf16.mxu0 0
      %1823 = vmatmul.mubr.bf16.gmra.mrb[0].mxu0 %v781
      %v1824 = vpop.f32.mrb[0].mxu0
      %v1825 = vadd.f32 0.0, %v1824
      %v1826 = vpop.f32.mrb[0].mxu0
      %v1827 = vpop.f32.mrb[0].mxu0
      %v1828 = vadd.f32 0.0, %v1827
      %v1829 = vpop.f32.mrb[0].mxu0
      %1830 = vmatprep.mubr.bf16.mxu0 0
      %1831 = vmatmul.mubr.bf16.gmra.mrb[0].mxu0 %v784
      %v1832 = vpop.f32.mrb[0].mxu0
      %v1833 = vadd.f32 0.0, %v1832
      %v1834 = vpop.f32.mrb[0].mxu0
      %v1835 = vpop.f32.mrb[0].mxu0
      %v1836 = vadd.f32 0.0, %v1835
      %v1837 = vpop.f32.mrb[0].mxu0
      %1838 = vmatprep.mubr.bf16.mxu0 0
      %1839 = vmatmul.mubr.bf16.gmra.mrb[0].mxu0 %v787
      %v1840 = vpop.f32.mrb[0].mxu0
      %v1841 = vadd.f32 0.0, %v1840
      %v1842 = vpop.f32.mrb[0].mxu0
      %v1843 = vpop.f32.mrb[0].mxu0
      %v1844 = vadd.f32 0.0, %v1843
      %v1845 = vpop.f32.mrb[0].mxu0
      %1846 = vmatprep.mubr.bf16.mxu0 0
      %1847 = vmatmul.mubr.bf16.gmra.mrb[0].mxu0 %v790
      %v1848 = vpop.f32.mrb[0].mxu0
      %v1849 = vadd.f32 0.0, %v1848
      %v1850 = vpop.f32.mrb[0].mxu0
      %v1851 = vpop.f32.mrb[0].mxu0
      %v1852 = vadd.f32 0.0, %v1851
      %v1853 = vpop.f32.mrb[0].mxu0
      %1854 = vmatprep.mubr.bf16.mxu0 0
      %1855 = vmatmul.mubr.bf16.gmra.mrb[0].mxu0 %v793
      %v1856 = vpop.f32.mrb[0].mxu0
      %v1857 = vadd.f32 0.0, %v1856
      %v1858 = vpop.f32.mrb[0].mxu0
      %v1859 = vpop.f32.mrb[0].mxu0
      %v1860 = vadd.f32 0.0, %v1859
      %v1861 = vpop.f32.mrb[0].mxu0
      %1862 = vmatprep.mubr.bf16.mxu0 0
      %1863 = vmatmul.mubr.bf16.gmra.mrb[0].mxu0 %v796
      %v1864 = vpop.f32.mrb[0].mxu0
      %v1865 = vadd.f32 0.0, %v1864
      %v1866 = vpop.f32.mrb[0].mxu0
      %v1867 = vpop.f32.mrb[0].mxu0
      %v1868 = vadd.f32 0.0, %v1867
      %v1869 = vpop.f32.mrb[0].mxu0
      %1870 = vmatprep.mubr.bf16.mxu0 0
      %1871 = vmatmul.mubr.bf16.gmra.mrb[0].mxu0 %v799
      %v1872 = vpop.f32.mrb[0].mxu0
      %v1873 = vadd.f32 0.0, %v1872
      %v1874 = vpop.f32.mrb[0].mxu0
      %v1875 = vpop.f32.mrb[0].mxu0
      %v1876 = vadd.f32 0.0, %v1875
      %v1877 = vpop.f32.mrb[0].mxu0
      %1878 = vmatprep.mubr.bf16.mxu0 0
      %1879 = vmatmul.mubr.bf16.gmra.mrb[0].mxu0 %v802
      %v1880 = vpop.f32.mrb[0].mxu0
      %v1881 = vadd.f32 0.0, %v1880
      %v1882 = vpop.f32.mrb[0].mxu0
      %v1883 = vpop.f32.mrb[0].mxu0
      %v1884 = vadd.f32 0.0, %v1883
      %v1885 = vpop.f32.mrb[0].mxu0
      %1886 = vmatprep.mubr.bf16.mxu0 0
      %1887 = vmatmul.mubr.bf16.gmra.mrb[0].mxu0 %v805
      %v1888 = vpop.f32.mrb[0].mxu0
      %v1889 = vadd.f32 0.0, %v1888
      %v1890 = vpop.f32.mrb[0].mxu0
      %v1891 = vpop.f32.mrb[0].mxu0
      %v1892 = vadd.f32 0.0, %v1891
      %v1893 = vpop.f32.mrb[0].mxu0
      %1894 = vmatprep.mubr.bf16.mxu0 0
      %1895 = vmatmul.mubr.bf16.gmra.mrb[0].mxu0 %v808
      %v1896 = vpop.f32.mrb[0].mxu0
      %v1897 = vadd.f32 0.0, %v1896
      %v1898 = vpop.f32.mrb[0].mxu0
      %v1899 = vpop.f32.mrb[0].mxu0
      %v1900 = vadd.f32 0.0, %v1899
      %v1901 = vpop.f32.mrb[0].mxu0
      %1902 = vmatprep.mubr.bf16.mxu0 0
      %1903 = vmatmul.mubr.bf16.gmra.mrb[0].mxu0 %v811
      %v1904 = vpop.f32.mrb[0].mxu0
      %v1905 = vadd.f32 0.0, %v1904
      %v1906 = vpop.f32.mrb[0].mxu0
      %v1907 = vpop.f32.mrb[0].mxu0
      %v1908 = vadd.f32 0.0, %v1907
      %v1909 = vpop.f32.mrb[0].mxu0
      %1910 = vmatprep.mubr.bf16.mxu0 0
      %1911 = vmatmul.mubr.bf16.gmra.mrb[0].mxu0 %v814
      %v1912 = vpop.f32.mrb[0].mxu0
      %v1913 = vadd.f32 0.0, %v1912
      %v1914 = vpop.f32.mrb[0].mxu0
      %v1915 = vpop.f32.mrb[0].mxu0
      %v1916 = vadd.f32 0.0, %v1915
      %v1917 = vpop.f32.mrb[0].mxu0
      %1918 = vmatprep.mubr.bf16.mxu0 0
      %1919 = vmatmul.mubr.bf16.gmra.mrb[0].mxu0 %v817
      %v1920 = vpop.f32.mrb[0].mxu0
      %v1921 = vadd.f32 0.0, %v1920
      %v1922 = vpop.f32.mrb[0].mxu0
      %v1923 = vpop.f32.mrb[0].mxu0
      %v1924 = vadd.f32 0.0, %v1923
      %v1925 = vpop.f32.mrb[0].mxu0
      %1926 = vmatprep.mubr.bf16.mxu0 0
      %1927 = vmatmul.mubr.bf16.gmra.mrb[0].mxu0 %v820
      %v1928 = vpop.f32.mrb[0].mxu0
      %v1929 = vadd.f32 0.0, %v1928
      %v1930 = vpop.f32.mrb[0].mxu0
      %v1931 = vpop.f32.mrb[0].mxu0
      %v1932 = vadd.f32 0.0, %v1931
      %v1933 = vpop.f32.mrb[0].mxu0
      %1934 = vmatprep.mubr.bf16.mxu0 0
      %1935 = vmatmul.mubr.bf16.gmra.mrb[0].mxu0 %v823
      %v1936 = vpop.f32.mrb[0].mxu0
      %v1937 = vadd.f32 0.0, %v1936
      %v1938 = vpop.f32.mrb[0].mxu0
      %v1939 = vpop.f32.mrb[0].mxu0
      %v1940 = vadd.f32 0.0, %v1939
      %v1941 = vpop.f32.mrb[0].mxu0
      %1942 = vmatprep.mubr.bf16.mxu0 0
      %1943 = vmatmul.mubr.bf16.gmra.mrb[0].mxu0 %v826
      %v1944 = vpop.f32.mrb[0].mxu0
      %v1945 = vadd.f32 0.0, %v1944
      %v1946 = vpop.f32.mrb[0].mxu0
      %v1947 = vpop.f32.mrb[0].mxu0
      %v1948 = vadd.f32 0.0, %v1947
      %v1949 = vpop.f32.mrb[0].mxu0
      %1950 = vmatprep.mubr.bf16.mxu0 0
      %1951 = vmatmul.mubr.bf16.gmra.mrb[0].mxu0 %v829
      %v1952 = vpop.f32.mrb[0].mxu0
      %v1953 = vadd.f32 0.0, %v1952
      %v1954 = vpop.f32.mrb[0].mxu0
      %v1955 = vpop.f32.mrb[0].mxu0
      %v1956 = vadd.f32 0.0, %v1955
      %v1957 = vpop.f32.mrb[0].mxu0
      %1958 = vmatprep.mubr.bf16.mxu0 0
      %1959 = vmatmul.mubr.bf16.gmra.mrb[0].mxu0 %v832
      %v1960 = vpop.f32.mrb[0].mxu0
      %v1961 = vadd.f32 0.0, %v1960
      %v1962 = vpop.f32.mrb[0].mxu0
      %v1963 = vpop.f32.mrb[0].mxu0
      %v1964 = vadd.f32 0.0, %v1963
      %v1965 = vpop.f32.mrb[0].mxu0
      %1966 = vmatprep.mubr.bf16.mxu0 0
      %1967 = vmatmul.mubr.bf16.gmra.mrb[0].mxu0 %v835
      %v1968 = vpop.f32.mrb[0].mxu0
      %v1969 = vadd.f32 0.0, %v1968
      %v1970 = vpop.f32.mrb[0].mxu0
      %v1971 = vpop.f32.mrb[0].mxu0
      %v1972 = vadd.f32 0.0, %v1971
      %v1973 = vpop.f32.mrb[0].mxu0
      %1974 = vmatprep.mubr.bf16.mxu0 0
      %1975 = vmatmul.mubr.bf16.gmra.mrb[0].mxu0 %v838
      %v1976 = vpop.f32.mrb[0].mxu0
      %v1977 = vadd.f32 0.0, %v1976
      %v1978 = vpop.f32.mrb[0].mxu0
      %v1979 = vpop.f32.mrb[0].mxu0
      %v1980 = vadd.f32 0.0, %v1979
      %v1981 = vpop.f32.mrb[0].mxu0
      %1982 = vmatprep.mubr.bf16.mxu0 0
      %1983 = vmatmul.mubr.bf16.gmra.mrb[0].mxu0 %v841
      %v1984 = vpop.f32.mrb[0].mxu0
      %v1985 = vadd.f32 0.0, %v1984
      %v1986 = vpop.f32.mrb[0].mxu0
      %v1987 = vpop.f32.mrb[0].mxu0
      %v1988 = vadd.f32 0.0, %v1987
      %v1989 = vpop.f32.mrb[0].mxu0
      %1990 = vmatprep.mubr.bf16.mxu0 0
      %1991 = vmatmul.mubr.bf16.gmra.mrb[0].mxu0 %v844
      %v1992 = vpop.f32.mrb[0].mxu0
      %v1993 = vadd.f32 0.0, %v1992
      %v1994 = vpop.f32.mrb[0].mxu0
      %v1995 = vpop.f32.mrb[0].mxu0
      %v1996 = vadd.f32 0.0, %v1995
      %v1997 = vpop.f32.mrb[0].mxu0
      %1998 = vmatprep.mubr.bf16.mxu0 0
      %1999 = vmatmul.mubr.bf16.gmra.mrb[0].mxu0 %v847
      %v2000 = vpop.f32.mrb[0].mxu0
      %v2001 = vadd.f32 0.0, %v2000
      %v2002 = vpop.f32.mrb[0].mxu0
      %v2003 = vpop.f32.mrb[0].mxu0
      %v2004 = vadd.f32 0.0, %v2003
      %v2005 = vpop.f32.mrb[0].mxu0
      %2006 = vmatprep.mubr.bf16.mxu0 0
      %2007 = vmatmul.mubr.bf16.gmra.mrb[0].mxu0 %v850
      %v2008 = vpop.f32.mrb[0].mxu0
      %v2009 = vadd.f32 0.0, %v2008
      %v2010 = vpop.f32.mrb[0].mxu0
      %v2011 = vpop.f32.mrb[0].mxu0
      %v2012 = vadd.f32 0.0, %v2011
      %v2013 = vpop.f32.mrb[0].mxu0
      %2014 = vmatprep.mubr.bf16.mxu0 0
      %2015 = vmatmul.mubr.bf16.gmra.mrb[0].mxu0 %v853
      %v2016 = vpop.f32.mrb[0].mxu0
      %v2017 = vadd.f32 0.0, %v2016
      %v2018 = vpop.f32.mrb[0].mxu0
      %v2019 = vpop.f32.mrb[0].mxu0
      %v2020 = vadd.f32 0.0, %v2019
      %v2021 = vpop.f32.mrb[0].mxu0
      %2022 = vmatprep.mubr.bf16.mxu0 0
      %2023 = vmatmul.mubr.bf16.gmra.mrb[0].mxu0 %v856
      %v2024 = vpop.f32.mrb[0].mxu0
      %v2025 = vadd.f32 0.0, %v2024
      %v2026 = vpop.f32.mrb[0].mxu0
      %v2027 = vpop.f32.mrb[0].mxu0
      %v2028 = vadd.f32 0.0, %v2027
      %v2029 = vpop.f32.mrb[0].mxu0
      %2030 = vmatprep.mubr.bf16.mxu0 0
      %2031 = vmatmul.mubr.bf16.gmra.mrb[0].mxu0 %v859
      %v2032 = vpop.f32.mrb[0].mxu0
      %v2033 = vadd.f32 0.0, %v2032
      %v2034 = vpop.f32.mrb[0].mxu0
      %v2035 = vpop.f32.mrb[0].mxu0
      %v2036 = vadd.f32 0.0, %v2035
      %v2037 = vpop.f32.mrb[0].mxu0
      %2038 = vmatprep.mubr.bf16.mxu0 0
      %2039 = vmatmul.mubr.bf16.gmra.mrb[0].mxu0 %v862
      %v2040 = vpop.f32.mrb[0].mxu0
      %v2041 = vadd.f32 0.0, %v2040
      %v2042 = vpop.f32.mrb[0].mxu0
      %v2043 = vpop.f32.mrb[0].mxu0
      %v2044 = vadd.f32 0.0, %v2043
      %v2045 = vpop.f32.mrb[0].mxu0
      %2046 = vmatprep.mubr.bf16.mxu0 0
      %2047 = vmatmul.mubr.bf16.gmra.mrb[0].mxu0 %v865
      %v2048 = vpop.f32.mrb[0].mxu0
      %v2049 = vadd.f32 0.0, %v2048
      %v2050 = vpop.f32.mrb[0].mxu0
      %v2051 = vpop.f32.mrb[0].mxu0
      %v2052 = vadd.f32 0.0, %v2051
      %v2053 = vpop.f32.mrb[0].mxu0
      %2054 = vmatprep.mubr.bf16.mxu0 0
      %2055 = vmatmul.mubr.bf16.gmra.mrb[0].mxu0 %v868
      %v2056 = vpop.f32.mrb[0].mxu0
      %v2057 = vadd.f32 0.0, %v2056
      %v2058 = vpop.f32.mrb[0].mxu0
      %v2059 = vpop.f32.mrb[0].mxu0
      %v2060 = vadd.f32 0.0, %v2059
      %v2061 = vpop.f32.mrb[0].mxu0
      %2062 = vmatprep.mubr.bf16.mxu0 0
      %2063 = vmatmul.mubr.bf16.gmra.mrb[0].mxu0 %v871
      %v2064 = vpop.f32.mrb[0].mxu0
      %v2065 = vadd.f32 0.0, %v2064
      %v2066 = vpop.f32.mrb[0].mxu0
      %v2067 = vpop.f32.mrb[0].mxu0
      %v2068 = vadd.f32 0.0, %v2067
      %v2069 = vpop.f32.mrb[0].mxu0
      %2070 = vmatprep.mubr.bf16.mxu0 0
      %2071 = vmatmul.mubr.bf16.gmra.mrb[0].mxu0 %v874
      %v2072 = vpop.f32.mrb[0].mxu0
      %v2073 = vadd.f32 0.0, %v2072
      %v2074 = vpop.f32.mrb[0].mxu0
      %v2075 = vpop.f32.mrb[0].mxu0
      %v2076 = vadd.f32 0.0, %v2075
      %v2077 = vpop.f32.mrb[0].mxu0
      %2078 = vmatprep.mubr.bf16.mxu0 0
      %2079 = vmatmul.mubr.bf16.gmra.mrb[0].mxu0 %v877
      %v2080 = vpop.f32.mrb[0].mxu0
      %v2081 = vadd.f32 0.0, %v2080
      %v2082 = vpop.f32.mrb[0].mxu0
      %v2083 = vpop.f32.mrb[0].mxu0
      %v2084 = vadd.f32 0.0, %v2083
      %v2085 = vpop.f32.mrb[0].mxu0
      %2086 = vmatprep.mubr.bf16.mxu0 0
      %2087 = vmatmul.mubr.bf16.gmra.mrb[0].mxu0 %v880
      %v2088 = vpop.f32.mrb[0].mxu0
      %v2089 = vadd.f32 0.0, %v2088
      %v2090 = vpop.f32.mrb[0].mxu0
      %v2091 = vpop.f32.mrb[0].mxu0
      %v2092 = vadd.f32 0.0, %v2091
      %v2093 = vpop.f32.mrb[0].mxu0
      %2094 = vmatprep.mubr.bf16.mxu0 0
      %2095 = vmatmul.mubr.bf16.gmra.mrb[0].mxu0 %v883
      %v2096 = vpop.f32.mrb[0].mxu0
      %v2097 = vadd.f32 0.0, %v2096
      %v2098 = vpop.f32.mrb[0].mxu0
      %v2099 = vpop.f32.mrb[0].mxu0
      %v2100 = vadd.f32 0.0, %v2099
      %v2101 = vpop.f32.mrb[0].mxu0
      %2102 = vmatprep.mubr.bf16.mxu0 0
      %2103 = vmatmul.mubr.bf16.gmra.mrb[0].mxu0 %v886
      %v2104 = vpop.f32.mrb[0].mxu0
      %v2105 = vadd.f32 0.0, %v2104
      %v2106 = vpop.f32.mrb[0].mxu0
      %v2107 = vpop.f32.mrb[0].mxu0
      %v2108 = vadd.f32 0.0, %v2107
      %v2109 = vpop.f32.mrb[0].mxu0
      %2110 = vmatprep.mubr.bf16.mxu0 0
      %2111 = vmatmul.mubr.bf16.gmra.mrb[0].mxu0 %v889
      %v2112 = vpop.f32.mrb[0].mxu0
      %v2113 = vadd.f32 0.0, %v2112
      %v2114 = vpop.f32.mrb[0].mxu0
      %v2115 = vpop.f32.mrb[0].mxu0
      %v2116 = vadd.f32 0.0, %v2115
      %v2117 = vpop.f32.mrb[0].mxu0
      %2118 = vdwg.mxu0
      %v2119 = vpack.c.bf16 %v940, %v936
      %v2120 = vpack.c.bf16 %v942, %v938
      %v2121 = vpack.c.bf16 %v1612, %v1609
      %v2122 = vpack.c.bf16 %v950, %v946
      %v2123 = vpack.c.bf16 %v952, %v948
      %v2124 = vpack.c.bf16 %v1620, %v1617
      %v2125 = vpack.c.bf16 %v960, %v956
      %v2126 = vpack.c.bf16 %v962, %v958
      %v2127 = vpack.c.bf16 %v1628, %v1625
      %v2128 = vpack.c.bf16 %v970, %v966
      %v2129 = vpack.c.bf16 %v972, %v968
      %v2130 = vpack.c.bf16 %v1636, %v1633
      %v2131 = vpack.c.bf16 %v980, %v976
      %v2132 = vpack.c.bf16 %v982, %v978
      %v2133 = vpack.c.bf16 %v1644, %v1641
      %v2134 = vpack.c.bf16 %v990, %v986
      %v2135 = vpack.c.bf16 %v992, %v988
      %v2136 = vpack.c.bf16 %v1652, %v1649
      %v2137 = vpack.c.bf16 %v1000, %v996
      %v2138 = vpack.c.bf16 %v1002, %v998
      %v2139 = vpack.c.bf16 %v1660, %v1657
      %v2140 = vpack.c.bf16 %v1010, %v1006
      %v2141 = vpack.c.bf16 %v1012, %v1008
      %v2142 = vpack.c.bf16 %v1668, %v1665
      %v2143 = vpack.c.bf16 %v1020, %v1016
      %v2144 = vpack.c.bf16 %v1022, %v1018
      %v2145 = vpack.c.bf16 %v1676, %v1673
      %v2146 = vpack.c.bf16 %v1030, %v1026
      %v2147 = vpack.c.bf16 %v1032, %v1028
      %v2148 = vpack.c.bf16 %v1684, %v1681
      %v2149 = vpack.c.bf16 %v1040, %v1036
      %v2150 = vpack.c.bf16 %v1042, %v1038
      %v2151 = vpack.c.bf16 %v1692, %v1689
      %v2152 = vpack.c.bf16 %v1050, %v1046
      %v2153 = vpack.c.bf16 %v1052, %v1048
      %v2154 = vpack.c.bf16 %v1700, %v1697
      %v2155 = vpack.c.bf16 %v1060, %v1056
      %v2156 = vpack.c.bf16 %v1062, %v1058
      %v2157 = vpack.c.bf16 %v1708, %v1705
      %v2158 = vpack.c.bf16 %v1070, %v1066
      %v2159 = vpack.c.bf16 %v1072, %v1068
      %v2160 = vpack.c.bf16 %v1716, %v1713
      %v2161 = vpack.c.bf16 %v1080, %v1076
      %v2162 = vpack.c.bf16 %v1082, %v1078
      %v2163 = vpack.c.bf16 %v1724, %v1721
      %v2164 = vpack.c.bf16 %v1090, %v1086
      %v2165 = vpack.c.bf16 %v1092, %v1088
      %v2166 = vpack.c.bf16 %v1732, %v1729
      %v2167 = vpack.c.bf16 %v1100, %v1096
      %v2168 = vpack.c.bf16 %v1102, %v1098
      %v2169 = vpack.c.bf16 %v1740, %v1737
      %v2170 = vpack.c.bf16 %v1110, %v1106
      %v2171 = vpack.c.bf16 %v1112, %v1108
      %v2172 = vpack.c.bf16 %v1748, %v1745
      %v2173 = vpack.c.bf16 %v1120, %v1116
      %v2174 = vpack.c.bf16 %v1122, %v1118
      %v2175 = vpack.c.bf16 %v1756, %v1753
      %v2176 = vpack.c.bf16 %v1130, %v1126
      %v2177 = vpack.c.bf16 %v1132, %v1128
      %v2178 = vpack.c.bf16 %v1764, %v1761
      %v2179 = vpack.c.bf16 %v1140, %v1136
      %v2180 = vpack.c.bf16 %v1142, %v1138
      %v2181 = vpack.c.bf16 %v1772, %v1769
      %v2182 = vpack.c.bf16 %v1150, %v1146
      %v2183 = vpack.c.bf16 %v1152, %v1148
      %v2184 = vpack.c.bf16 %v1780, %v1777
      %v2185 = vpack.c.bf16 %v1160, %v1156
      %v2186 = vpack.c.bf16 %v1162, %v1158
      %v2187 = vpack.c.bf16 %v1788, %v1785
      %v2188 = vpack.c.bf16 %v1170, %v1166
      %v2189 = vpack.c.bf16 %v1172, %v1168
      %v2190 = vpack.c.bf16 %v1796, %v1793
      %v2191 = vpack.c.bf16 %v1180, %v1176
      %v2192 = vpack.c.bf16 %v1182, %v1178
      %v2193 = vpack.c.bf16 %v1804, %v1801
      %v2194 = vpack.c.bf16 %v1190, %v1186
      %v2195 = vpack.c.bf16 %v1192, %v1188
      %v2196 = vpack.c.bf16 %v1812, %v1809
      %v2197 = vpack.c.bf16 %v1200, %v1196
      %v2198 = vpack.c.bf16 %v1202, %v1198
      %v2199 = vpack.c.bf16 %v1820, %v1817
      %v2200 = vpack.c.bf16 %v1210, %v1206
      %v2201 = vpack.c.bf16 %v1212, %v1208
      %v2202 = vpack.c.bf16 %v1828, %v1825
      %v2203 = vpack.c.bf16 %v1220, %v1216
      %v2204 = vpack.c.bf16 %v1222, %v1218
      %v2205 = vpack.c.bf16 %v1836, %v1833
      %v2206 = vpack.c.bf16 %v1230, %v1226
      %v2207 = vpack.c.bf16 %v1232, %v1228
      %v2208 = vpack.c.bf16 %v1844, %v1841
      %v2209 = vpack.c.bf16 %v1240, %v1236
      %v2210 = vpack.c.bf16 %v1242, %v1238
      %v2211 = vpack.c.bf16 %v1852, %v1849
      %v2212 = vpack.c.bf16 %v1250, %v1246
      %v2213 = vpack.c.bf16 %v1252, %v1248
      %v2214 = vpack.c.bf16 %v1860, %v1857
      %v2215 = vpack.c.bf16 %v1260, %v1256
      %v2216 = vpack.c.bf16 %v1262, %v1258
      %v2217 = vpack.c.bf16 %v1868, %v1865
      %v2218 = vpack.c.bf16 %v1270, %v1266
      %v2219 = vpack.c.bf16 %v1272, %v1268
      %v2220 = vpack.c.bf16 %v1876, %v1873
      %v2221 = vpack.c.bf16 %v1280, %v1276
      %v2222 = vpack.c.bf16 %v1282, %v1278
      %v2223 = vpack.c.bf16 %v1884, %v1881
      %v2224 = vpack.c.bf16 %v1290, %v1286
      %v2225 = vpack.c.bf16 %v1292, %v1288
      %v2226 = vpack.c.bf16 %v1892, %v1889
      %v2227 = vpack.c.bf16 %v1300, %v1296
      %v2228 = vpack.c.bf16 %v1302, %v1298
      %v2229 = vpack.c.bf16 %v1900, %v1897
      %v2230 = vpack.c.bf16 %v1310, %v1306
      %v2231 = vpack.c.bf16 %v1312, %v1308
      %v2232 = vpack.c.bf16 %v1908, %v1905
      %v2233 = vpack.c.bf16 %v1320, %v1316
      %v2234 = vpack.c.bf16 %v1322, %v1318
      %v2235 = vpack.c.bf16 %v1916, %v1913
      %v2236 = vpack.c.bf16 %v1330, %v1326
      %v2237 = vpack.c.bf16 %v1332, %v1328
      %v2238 = vpack.c.bf16 %v1924, %v1921
      %v2239 = vpack.c.bf16 %v1340, %v1336
      %v2240 = vpack.c.bf16 %v1342, %v1338
      %v2241 = vpack.c.bf16 %v1932, %v1929
      %v2242 = vpack.c.bf16 %v1350, %v1346
      %v2243 = vpack.c.bf16 %v1352, %v1348
      %v2244 = vpack.c.bf16 %v1940, %v1937
      %v2245 = vpack.c.bf16 %v1360, %v1356
      %v2246 = vpack.c.bf16 %v1362, %v1358
      %v2247 = vpack.c.bf16 %v1948, %v1945
      %v2248 = vpack.c.bf16 %v1370, %v1366
      %v2249 = vpack.c.bf16 %v1372, %v1368
      %v2250 = vpack.c.bf16 %v1956, %v1953
      %v2251 = vpack.c.bf16 %v1380, %v1376
      %v2252 = vpack.c.bf16 %v1382, %v1378
      %v2253 = vpack.c.bf16 %v1964, %v1961
      %v2254 = vpack.c.bf16 %v1390, %v1386
      %v2255 = vpack.c.bf16 %v1392, %v1388
      %v2256 = vpack.c.bf16 %v1972, %v1969
      %v2257 = vpack.c.bf16 %v1400, %v1396
      %v2258 = vpack.c.bf16 %v1402, %v1398
      %v2259 = vpack.c.bf16 %v1980, %v1977
      %v2260 = vpack.c.bf16 %v1410, %v1406
      %v2261 = vpack.c.bf16 %v1412, %v1408
      %v2262 = vpack.c.bf16 %v1988, %v1985
      %v2263 = vpack.c.bf16 %v1420, %v1416
      %v2264 = vpack.c.bf16 %v1422, %v1418
      %v2265 = vpack.c.bf16 %v1996, %v1993
      %v2266 = vpack.c.bf16 %v1430, %v1426
      %v2267 = vpack.c.bf16 %v1432, %v1428
      %v2268 = vpack.c.bf16 %v2004, %v2001
      %v2269 = vpack.c.bf16 %v1440, %v1436
      %v2270 = vpack.c.bf16 %v1442, %v1438
      %v2271 = vpack.c.bf16 %v2012, %v2009
      %v2272 = vpack.c.bf16 %v1450, %v1446
      %v2273 = vpack.c.bf16 %v1452, %v1448
      %v2274 = vpack.c.bf16 %v2020, %v2017
      %v2275 = vpack.c.bf16 %v1460, %v1456
      %v2276 = vpack.c.bf16 %v1462, %v1458
      %v2277 = vpack.c.bf16 %v2028, %v2025
      %v2278 = vpack.c.bf16 %v1470, %v1466
      %v2279 = vpack.c.bf16 %v1472, %v1468
      %v2280 = vpack.c.bf16 %v2036, %v2033
      %v2281 = vpack.c.bf16 %v1480, %v1476
      %v2282 = vpack.c.bf16 %v1482, %v1478
      %v2283 = vpack.c.bf16 %v2044, %v2041
      %v2284 = vpack.c.bf16 %v1490, %v1486
      %v2285 = vpack.c.bf16 %v1492, %v1488
      %v2286 = vpack.c.bf16 %v2052, %v2049
      %v2287 = vpack.c.bf16 %v1500, %v1496
      %v2288 = vpack.c.bf16 %v1502, %v1498
      %v2289 = vpack.c.bf16 %v2060, %v2057
      %v2290 = vpack.c.bf16 %v1510, %v1506
      %v2291 = vpack.c.bf16 %v1512, %v1508
      %v2292 = vpack.c.bf16 %v2068, %v2065
      %v2293 = vpack.c.bf16 %v1520, %v1516
      %v2294 = vpack.c.bf16 %v1522, %v1518
      %v2295 = vpack.c.bf16 %v2076, %v2073
      %v2296 = vpack.c.bf16 %v1530, %v1526
      %v2297 = vpack.c.bf16 %v1532, %v1528
      %v2298 = vpack.c.bf16 %v2084, %v2081
      %v2299 = vpack.c.bf16 %v1540, %v1536
      %v2300 = vpack.c.bf16 %v1542, %v1538
      %v2301 = vpack.c.bf16 %v2092, %v2089
      %v2302 = vpack.c.bf16 %v1550, %v1546
      %v2303 = vpack.c.bf16 %v1552, %v1548
      %v2304 = vpack.c.bf16 %v2100, %v2097
      %v2305 = vpack.c.bf16 %v1560, %v1556
      %v2306 = vpack.c.bf16 %v1562, %v1558
      %v2307 = vpack.c.bf16 %v2108, %v2105
      %v2308 = vpack.c.bf16 %v1570, %v1566
      %v2309 = vpack.c.bf16 %v1572, %v1568
      %v2310 = vpack.c.bf16 %v2116, %v2113
      %v2311 = vtanh.bf16.pop %v2119
      %v2312 = vtanh.bf16.pop %v2120
      %v2313 = vtanh.bf16.pop %v2121
      %v2314 = vtanh.bf16.pop %v2122
      %v2315 = vtanh.bf16.pop %v2123
      %v2316 = vtanh.bf16.pop %v2124
      %v2317 = vtanh.bf16.pop %v2125
      %v2318 = vtanh.bf16.pop %v2126
      %v2319 = vtanh.bf16.pop %v2127
      %v2320 = vtanh.bf16.pop %v2128
      %v2321 = vtanh.bf16.pop %v2129
      %v2322 = vtanh.bf16.pop %v2130
      %v2323 = vtanh.bf16.pop %v2131
      %v2324 = vtanh.bf16.pop %v2132
      %v2325 = vtanh.bf16.pop %v2133
      %v2326 = vtanh.bf16.pop %v2134
      %v2327 = vtanh.bf16.pop %v2135
      %v2328 = vtanh.bf16.pop %v2136
      %v2329 = vtanh.bf16.pop %v2137
      %v2330 = vtanh.bf16.pop %v2138
      %v2331 = vtanh.bf16.pop %v2139
      %v2332 = vtanh.bf16.pop %v2140
      %v2333 = vtanh.bf16.pop %v2141
      %v2334 = vtanh.bf16.pop %v2142
      %v2335 = vtanh.bf16.pop %v2143
      %v2336 = vtanh.bf16.pop %v2144
      %v2337 = vtanh.bf16.pop %v2145
      %v2338 = vtanh.bf16.pop %v2146
      %v2339 = vtanh.bf16.pop %v2147
      %v2340 = vtanh.bf16.pop %v2148
      %v2341 = vtanh.bf16.pop %v2149
      %v2342 = vtanh.bf16.pop %v2150
      %v2343 = vtanh.bf16.pop %v2151
      %v2344 = vtanh.bf16.pop %v2152
      %v2345 = vtanh.bf16.pop %v2153
      %v2346 = vtanh.bf16.pop %v2154
      %v2347 = vtanh.bf16.pop %v2155
      %v2348 = vtanh.bf16.pop %v2156
      %v2349 = vtanh.bf16.pop %v2157
      %v2350 = vtanh.bf16.pop %v2158
      %v2351 = vtanh.bf16.pop %v2159
      %v2352 = vtanh.bf16.pop %v2160
      %v2353 = vtanh.bf16.pop %v2161
      %v2354 = vtanh.bf16.pop %v2162
      %v2355 = vtanh.bf16.pop %v2163
      %v2356 = vtanh.bf16.pop %v2164
      %v2357 = vtanh.bf16.pop %v2165
      %v2358 = vtanh.bf16.pop %v2166
      %v2359 = vtanh.bf16.pop %v2167
      %v2360 = vtanh.bf16.pop %v2168
      %v2361 = vtanh.bf16.pop %v2169
      %v2362 = vtanh.bf16.pop %v2170
      %v2363 = vtanh.bf16.pop %v2171
      %v2364 = vtanh.bf16.pop %v2172
      %v2365 = vtanh.bf16.pop %v2173
      %v2366 = vtanh.bf16.pop %v2174
      %v2367 = vtanh.bf16.pop %v2175
      %v2368 = vtanh.bf16.pop %v2176
      %v2369 = vtanh.bf16.pop %v2177
      %v2370 = vtanh.bf16.pop %v2178
      %v2371 = vtanh.bf16.pop %v2179
      %v2372 = vtanh.bf16.pop %v2180
      %v2373 = vtanh.bf16.pop %v2181
      %v2374 = vtanh.bf16.pop %v2182
      %v2375 = vtanh.bf16.pop %v2183
      %v2376 = vtanh.bf16.pop %v2184
      %v2377 = vtanh.bf16.pop %v2185
      %v2378 = vtanh.bf16.pop %v2186
      %v2379 = vtanh.bf16.pop %v2187
      %v2380 = vtanh.bf16.pop %v2188
      %v2381 = vtanh.bf16.pop %v2189
      %v2382 = vtanh.bf16.pop %v2190
      %v2383 = vtanh.bf16.pop %v2191
      %v2384 = vtanh.bf16.pop %v2192
      %v2385 = vtanh.bf16.pop %v2193
      %v2386 = vtanh.bf16.pop %v2194
      %v2387 = vtanh.bf16.pop %v2195
      %v2388 = vtanh.bf16.pop %v2196
      %v2389 = vtanh.bf16.pop %v2197
      %v2390 = vtanh.bf16.pop %v2198
      %v2391 = vtanh.bf16.pop %v2199
      %v2392 = vtanh.bf16.pop %v2200
      %v2393 = vtanh.bf16.pop %v2201
      %v2394 = vtanh.bf16.pop %v2202
      %v2395 = vtanh.bf16.pop %v2203
      %v2396 = vtanh.bf16.pop %v2204
      %v2397 = vtanh.bf16.pop %v2205
      %v2398 = vtanh.bf16.pop %v2206
      %v2399 = vtanh.bf16.pop %v2207
      %v2400 = vtanh.bf16.pop %v2208
      %v2401 = vtanh.bf16.pop %v2209
      %v2402 = vtanh.bf16.pop %v2210
      %v2403 = vtanh.bf16.pop %v2211
      %v2404 = vtanh.bf16.pop %v2212
      %v2405 = vtanh.bf16.pop %v2213
      %v2406 = vtanh.bf16.pop %v2214
      %v2407 = vtanh.bf16.pop %v2215
      %v2408 = vtanh.bf16.pop %v2216
      %v2409 = vtanh.bf16.pop %v2217
      %v2410 = vtanh.bf16.pop %v2218
      %v2411 = vtanh.bf16.pop %v2219
      %v2412 = vtanh.bf16.pop %v2220
      %v2413 = vtanh.bf16.pop %v2221
      %v2414 = vtanh.bf16.pop %v2222
      %v2415 = vtanh.bf16.pop %v2223
      %v2416 = vtanh.bf16.pop %v2224
      %v2417 = vtanh.bf16.pop %v2225
      %v2418 = vtanh.bf16.pop %v2226
      %v2419 = vtanh.bf16.pop %v2227
      %v2420 = vtanh.bf16.pop %v2228
      %v2421 = vtanh.bf16.pop %v2229
      %v2422 = vtanh.bf16.pop %v2230
      %v2423 = vtanh.bf16.pop %v2231
      %v2424 = vtanh.bf16.pop %v2232
      %v2425 = vtanh.bf16.pop %v2233
      %v2426 = vtanh.bf16.pop %v2234
      %v2427 = vtanh.bf16.pop %v2235
      %v2428 = vtanh.bf16.pop %v2236
      %v2429 = vtanh.bf16.pop %v2237
      %v2430 = vtanh.bf16.pop %v2238
      %v2431 = vtanh.bf16.pop %v2239
      %v2432 = vtanh.bf16.pop %v2240
      %v2433 = vtanh.bf16.pop %v2241
      %v2434 = vtanh.bf16.pop %v2242
      %v2435 = vtanh.bf16.pop %v2243
      %v2436 = vtanh.bf16.pop %v2244
      %v2437 = vtanh.bf16.pop %v2245
      %v2438 = vtanh.bf16.pop %v2246
      %v2439 = vtanh.bf16.pop %v2247
      %v2440 = vtanh.bf16.pop %v2248
      %v2441 = vtanh.bf16.pop %v2249
      %v2442 = vtanh.bf16.pop %v2250
      %v2443 = vtanh.bf16.pop %v2251
      %v2444 = vtanh.bf16.pop %v2252
      %v2445 = vtanh.bf16.pop %v2253
      %v2446 = vtanh.bf16.pop %v2254
      %v2447 = vtanh.bf16.pop %v2255
      %v2448 = vtanh.bf16.pop %v2256
      %v2449 = vtanh.bf16.pop %v2257
      %v2450 = vtanh.bf16.pop %v2258
      %v2451 = vtanh.bf16.pop %v2259
      %v2452 = vtanh.bf16.pop %v2260
      %v2453 = vtanh.bf16.pop %v2261
      %v2454 = vtanh.bf16.pop %v2262
      %v2455 = vtanh.bf16.pop %v2263
      %v2456 = vtanh.bf16.pop %v2264
      %v2457 = vtanh.bf16.pop %v2265
      %v2458 = vtanh.bf16.pop %v2266
      %v2459 = vtanh.bf16.pop %v2267
      %v2460 = vtanh.bf16.pop %v2268
      %v2461 = vtanh.bf16.pop %v2269
      %v2462 = vtanh.bf16.pop %v2270
      %v2463 = vtanh.bf16.pop %v2271
      %v2464 = vtanh.bf16.pop %v2272
      %v2465 = vtanh.bf16.pop %v2273
      %v2466 = vtanh.bf16.pop %v2274
      %v2467 = vtanh.bf16.pop %v2275
      %v2468 = vtanh.bf16.pop %v2276
      %v2469 = vtanh.bf16.pop %v2277
      %v2470 = vtanh.bf16.pop %v2278
      %v2471 = vtanh.bf16.pop %v2279
      %v2472 = vtanh.bf16.pop %v2280
      %v2473 = vtanh.bf16.pop %v2281
      %v2474 = vtanh.bf16.pop %v2282
      %v2475 = vtanh.bf16.pop %v2283
      %v2476 = vtanh.bf16.pop %v2284
      %v2477 = vtanh.bf16.pop %v2285
      %v2478 = vtanh.bf16.pop %v2286
      %v2479 = vtanh.bf16.pop %v2287
      %v2480 = vtanh.bf16.pop %v2288
      %v2481 = vtanh.bf16.pop %v2289
      %v2482 = vtanh.bf16.pop %v2290
      %v2483 = vtanh.bf16.pop %v2291
      %v2484 = vtanh.bf16.pop %v2292
      %v2485 = vtanh.bf16.pop %v2293
      %v2486 = vtanh.bf16.pop %v2294
      %v2487 = vtanh.bf16.pop %v2295
      %v2488 = vtanh.bf16.pop %v2296
      %v2489 = vtanh.bf16.pop %v2297
      %v2490 = vtanh.bf16.pop %v2298
      %v2491 = vtanh.bf16.pop %v2299
      %v2492 = vtanh.bf16.pop %v2300
      %v2493 = vtanh.bf16.pop %v2301
      %v2494 = vtanh.bf16.pop %v2302
      %v2495 = vtanh.bf16.pop %v2303
      %v2496 = vtanh.bf16.pop %v2304
      %v2497 = vtanh.bf16.pop %v2305
      %v2498 = vtanh.bf16.pop %v2306
      %v2499 = vtanh.bf16.pop %v2307
      %v2500 = vtanh.bf16.pop %v2308
      %v2501 = vtanh.bf16.pop %v2309
      %v2502 = vtanh.bf16.pop %v2310
      %v2503 = vld [vmem:[%s222] sm:$0xff]
      %v2505 = vcombine.high %v2503, %v2503
      %v2507 = vunpack.c.l.s4 1966171168
      %v2508 = vunpack.c.0.s8 %v2507
      %v2509 = vlaneseq
      %v2510 = vshrl.u32 %v2509, 7
      %v2511 = vsub.s32 %v2508, %v2510
      %v2512 = vrot.slane %v2503, %v2511
      %v2514 = vunpack.c.l.s4 1966171168
      %v2515 = vunpack.c.0.s8 %v2514
      %v2516 = vlaneseq
      %v2517 = vshrl.u32 %v2516, 7
      %v2518 = vsub.s32 %v2515, %v2517
      %v2519 = vrot.slane %v2505, %v2518
      %v2520 = vcombine.high %v2512, %v2512
      %v2521 = vcombine.high %v2519, %v2519
      %v2523 = vunpack.c.l.s4 1966171168
      %v2524 = vunpack.c.0.s8 %v2523
      %v2525 = vlaneseq
      %v2526 = vshrl.u32 %v2525, 7
      %v2527 = vsub.s32 %v2524, %v2526
      %v2528 = vrot.slane %v2512, %v2527
      %v2530 = vunpack.c.l.s4 1966171168
      %v2531 = vunpack.c.0.s8 %v2530
      %v2532 = vlaneseq
      %v2533 = vshrl.u32 %v2532, 7
      %v2534 = vsub.s32 %v2531, %v2533
      %v2535 = vrot.slane %v2519, %v2534
      %v2537 = vunpack.c.l.s4 1966171168
      %v2538 = vunpack.c.0.s8 %v2537
      %v2539 = vlaneseq
      %v2540 = vshrl.u32 %v2539, 7
      %v2541 = vsub.s32 %v2538, %v2540
      %v2542 = vrot.slane %v2520, %v2541
      %v2544 = vunpack.c.l.s4 1966171168
      %v2545 = vunpack.c.0.s8 %v2544
      %v2546 = vlaneseq
      %v2547 = vshrl.u32 %v2546, 7
      %v2548 = vsub.s32 %v2545, %v2547
      %v2549 = vrot.slane %v2521, %v2548
      %v2550 = vcombine.high %v2528, %v2528
      %v2551 = vcombine.high %v2535, %v2535
      %v2552 = vcombine.high %v2542, %v2542
      %v2553 = vcombine.high %v2549, %v2549
      %2562 = vmatprep.subr.bf16.mxu0 %v2312
      %2563 = vmatpush1.bf16.msra.mxu0 %v2311
      %2564 = vmatprep.subr.bf16.mxu0 %v2315
      %2565 = vmatpush1.bf16.msra.mxu0 %v2314
      %2566 = vmatprep.subr.bf16.mxu0 %v2318
      %2567 = vmatpush1.bf16.msra.mxu0 %v2317
      %2568 = vmatprep.subr.bf16.mxu0 %v2321
      %2569 = vmatpush1.bf16.msra.mxu0 %v2320
      %2570 = vmatprep.subr.bf16.mxu0 %v2324
      %2571 = vmatpush1.bf16.msra.mxu0 %v2323
      %2572 = vmatprep.subr.bf16.mxu0 %v2327
      %2573 = vmatpush1.bf16.msra.mxu0 %v2326
      %2574 = vmatprep.subr.bf16.mxu0 %v2330
      %2575 = vmatpush1.bf16.msra.mxu0 %v2329
      %2576 = vmatprep.subr.bf16.mxu0 %v2333
      %2577 = vmatpush1.bf16.msra.mxu0 %v2332
      %2578 = vmatprep.subr.bf16.mxu0 %v2336
      %2579 = vmatpush1.bf16.msra.mxu0 %v2335
      %2580 = vmatprep.subr.bf16.mxu0 %v2339
      %2581 = vmatpush1.bf16.msra.mxu0 %v2338
      %2582 = vmatprep.subr.bf16.mxu0 %v2342
      %2583 = vmatpush1.bf16.msra.mxu0 %v2341
      %2584 = vmatprep.subr.bf16.mxu0 %v2345
      %2585 = vmatpush1.bf16.msra.mxu0 %v2344
      %2586 = vmatprep.subr.bf16.mxu0 %v2348
      %2587 = vmatpush1.bf16.msra.mxu0 %v2347
      %2588 = vmatprep.subr.bf16.mxu0 %v2351
      %2589 = vmatpush1.bf16.msra.mxu0 %v2350
      %2590 = vmatprep.subr.bf16.mxu0 %v2354
      %2591 = vmatpush1.bf16.msra.mxu0 %v2353
      %2592 = vmatprep.subr.bf16.mxu0 %v2357
      %2593 = vmatpush1.bf16.msra.mxu0 %v2356
      %2594 = vmatprep.mubr.bf16.mxu0 %v2542
      %2595 = vmatmul.mubr.bf16.gmra.mrb[0].mxu0 %v2528
      %v2596 = vpop.f32.mrb[0].mxu0
      %v2597 = vadd.f32 0.0, %v2596
      %v2598 = vpop.f32.mrb[0].mxu0
      %v2599 = vadd.f32 0.0, %v2598
      %v2600 = vpop.f32.mrb[0].mxu0
      %v2601 = vpop.f32.mrb[0].mxu0
      %2602 = vdwg.mxu0
      %2603 = vmatprep.subr.bf16.mxu0 %v2360
      %2604 = vmatpush1.bf16.msra.mxu0 %v2359
      %2605 = vmatprep.subr.bf16.mxu0 %v2363
      %2606 = vmatpush1.bf16.msra.mxu0 %v2362
      %2607 = vmatprep.subr.bf16.mxu0 %v2366
      %2608 = vmatpush1.bf16.msra.mxu0 %v2365
      %2609 = vmatprep.subr.bf16.mxu0 %v2369
      %2610 = vmatpush1.bf16.msra.mxu0 %v2368
      %2611 = vmatprep.subr.bf16.mxu0 %v2372
      %2612 = vmatpush1.bf16.msra.mxu0 %v2371
      %2613 = vmatprep.subr.bf16.mxu0 %v2375
      %2614 = vmatpush1.bf16.msra.mxu0 %v2374
      %2615 = vmatprep.subr.bf16.mxu0 %v2378
      %2616 = vmatpush1.bf16.msra.mxu0 %v2377
      %2617 = vmatprep.subr.bf16.mxu0 %v2381
      %2618 = vmatpush1.bf16.msra.mxu0 %v2380
      %2619 = vmatprep.subr.bf16.mxu0 %v2384
      %2620 = vmatpush1.bf16.msra.mxu0 %v2383
      %2621 = vmatprep.subr.bf16.mxu0 %v2387
      %2622 = vmatpush1.bf16.msra.mxu0 %v2386
      %2623 = vmatprep.subr.bf16.mxu0 %v2390
      %2624 = vmatpush1.bf16.msra.mxu0 %v2389
      %2625 = vmatprep.subr.bf16.mxu0 %v2393
      %2626 = vmatpush1.bf16.msra.mxu0 %v2392
      %2627 = vmatprep.subr.bf16.mxu0 %v2396
      %2628 = vmatpush1.bf16.msra.mxu0 %v2395
      %2629 = vmatprep.subr.bf16.mxu0 %v2399
      %2630 = vmatpush1.bf16.msra.mxu0 %v2398
      %2631 = vmatprep.subr.bf16.mxu0 %v2402
      %2632 = vmatpush1.bf16.msra.mxu0 %v2401
      %2633 = vmatprep.subr.bf16.mxu0 %v2405
      %2634 = vmatpush1.bf16.msra.mxu0 %v2404
      %2635 = vmatprep.mubr.bf16.mxu0 %v2552
      %2636 = vmatmul.mubr.bf16.gmra.mrb[0].mxu0 %v2550
      %v2637 = vpop.f32.mrb[0].mxu0
      %v2638 = vadd.f32 %v2597, %v2637
      %v2639 = vpop.f32.mrb[0].mxu0
      %v2640 = vadd.f32 %v2599, %v2639
      %v2641 = vpop.f32.mrb[0].mxu0
      %v2642 = vpop.f32.mrb[0].mxu0
      %2643 = vdwg.mxu0
      %2644 = vmatprep.subr.bf16.mxu0 %v2408
      %2645 = vmatpush1.bf16.msra.mxu0 %v2407
      %2646 = vmatprep.subr.bf16.mxu0 %v2411
      %2647 = vmatpush1.bf16.msra.mxu0 %v2410
      %2648 = vmatprep.subr.bf16.mxu0 %v2414
      %2649 = vmatpush1.bf16.msra.mxu0 %v2413
      %2650 = vmatprep.subr.bf16.mxu0 %v2417
      %2651 = vmatpush1.bf16.msra.mxu0 %v2416
      %2652 = vmatprep.subr.bf16.mxu0 %v2420
      %2653 = vmatpush1.bf16.msra.mxu0 %v2419
      %2654 = vmatprep.subr.bf16.mxu0 %v2423
      %2655 = vmatpush1.bf16.msra.mxu0 %v2422
      %2656 = vmatprep.subr.bf16.mxu0 %v2426
      %2657 = vmatpush1.bf16.msra.mxu0 %v2425
      %2658 = vmatprep.subr.bf16.mxu0 %v2429
      %2659 = vmatpush1.bf16.msra.mxu0 %v2428
      %2660 = vmatprep.subr.bf16.mxu0 %v2432
      %2661 = vmatpush1.bf16.msra.mxu0 %v2431
      %2662 = vmatprep.subr.bf16.mxu0 %v2435
      %2663 = vmatpush1.bf16.msra.mxu0 %v2434
      %2664 = vmatprep.subr.bf16.mxu0 %v2438
      %2665 = vmatpush1.bf16.msra.mxu0 %v2437
      %2666 = vmatprep.subr.bf16.mxu0 %v2441
      %2667 = vmatpush1.bf16.msra.mxu0 %v2440
      %2668 = vmatprep.subr.bf16.mxu0 %v2444
      %2669 = vmatpush1.bf16.msra.mxu0 %v2443
      %2670 = vmatprep.subr.bf16.mxu0 %v2447
      %2671 = vmatpush1.bf16.msra.mxu0 %v2446
      %2672 = vmatprep.subr.bf16.mxu0 %v2450
      %2673 = vmatpush1.bf16.msra.mxu0 %v2449
      %2674 = vmatprep.subr.bf16.mxu0 %v2453
      %2675 = vmatpush1.bf16.msra.mxu0 %v2452
      %2676 = vmatprep.mubr.bf16.mxu0 %v2549
      %2677 = vmatmul.mubr.bf16.gmra.mrb[0].mxu0 %v2535
      %v2678 = vpop.f32.mrb[0].mxu0
      %v2679 = vadd.f32 %v2638, %v2678
      %v2680 = vpop.f32.mrb[0].mxu0
      %v2681 = vadd.f32 %v2640, %v2680
      %v2682 = vpop.f32.mrb[0].mxu0
      %v2683 = vpop.f32.mrb[0].mxu0
      %2684 = vdwg.mxu0
      %2685 = vmatprep.subr.bf16.mxu0 %v2456
      %2686 = vmatpush1.bf16.msra.mxu0 %v2455
      %2687 = vmatprep.subr.bf16.mxu0 %v2459
      %2688 = vmatpush1.bf16.msra.mxu0 %v2458
      %2689 = vmatprep.subr.bf16.mxu0 %v2462
      %2690 = vmatpush1.bf16.msra.mxu0 %v2461
      %2691 = vmatprep.subr.bf16.mxu0 %v2465
      %2692 = vmatpush1.bf16.msra.mxu0 %v2464
      %2693 = vmatprep.subr.bf16.mxu0 %v2468
      %2694 = vmatpush1.bf16.msra.mxu0 %v2467
      %2695 = vmatprep.subr.bf16.mxu0 %v2471
      %2696 = vmatpush1.bf16.msra.mxu0 %v2470
      %2697 = vmatprep.subr.bf16.mxu0 %v2474
      %2698 = vmatpush1.bf16.msra.mxu0 %v2473
      %2699 = vmatprep.subr.bf16.mxu0 %v2477
      %2700 = vmatpush1.bf16.msra.mxu0 %v2476
      %2701 = vmatprep.subr.bf16.mxu0 %v2480
      %2702 = vmatpush1.bf16.msra.mxu0 %v2479
      %2703 = vmatprep.subr.bf16.mxu0 %v2483
      %2704 = vmatpush1.bf16.msra.mxu0 %v2482
      %2705 = vmatprep.subr.bf16.mxu0 %v2486
      %2706 = vmatpush1.bf16.msra.mxu0 %v2485
      %2707 = vmatprep.subr.bf16.mxu0 %v2489
      %2708 = vmatpush1.bf16.msra.mxu0 %v2488
      %2709 = vmatprep.subr.bf16.mxu0 %v2492
      %2710 = vmatpush1.bf16.msra.mxu0 %v2491
      %2711 = vmatprep.subr.bf16.mxu0 %v2495
      %2712 = vmatpush1.bf16.msra.mxu0 %v2494
      %2713 = vmatprep.subr.bf16.mxu0 %v2498
      %2714 = vmatpush1.bf16.msra.mxu0 %v2497
      %2715 = vmatprep.subr.bf16.mxu0 %v2501
      %2716 = vmatpush1.bf16.msra.mxu0 %v2500
      %2717 = vmatprep.mubr.bf16.mxu0 %v2553
      %2718 = vmatmul.mubr.bf16.gmra.mrb[0].mxu0 %v2551
      %v2719 = vpop.f32.mrb[0].mxu0
      %v2720 = vadd.f32 %v2679, %v2719
      %v2721 = vpop.f32.mrb[0].mxu0
      %v2722 = vadd.f32 %v2681, %v2721
      %v2723 = vpop.f32.mrb[0].mxu0
      %v2724 = vpop.f32.mrb[0].mxu0
      %2725 = vdwg.mxu0
      %2726 = vmatprep.subr.bf16.mxu0 0
      %2727 = vmatpush1.bf16.msra.mxu0 %v2313
      %2728 = vmatprep.subr.bf16.mxu0 0
      %2729 = vmatpush1.bf16.msra.mxu0 %v2316
      %2730 = vmatprep.subr.bf16.mxu0 0
      %2731 = vmatpush1.bf16.msra.mxu0 %v2319
      %2732 = vmatprep.subr.bf16.mxu0 0
      %2733 = vmatpush1.bf16.msra.mxu0 %v2322
      %2734 = vmatprep.subr.bf16.mxu0 0
      %2735 = vmatpush1.bf16.msra.mxu0 %v2325
      %2736 = vmatprep.subr.bf16.mxu0 0
      %2737 = vmatpush1.bf16.msra.mxu0 %v2328
      %2738 = vmatprep.subr.bf16.mxu0 0
      %2739 = vmatpush1.bf16.msra.mxu0 %v2331
      %2740 = vmatprep.subr.bf16.mxu0 0
      %2741 = vmatpush1.bf16.msra.mxu0 %v2334
      %2742 = vmatprep.subr.bf16.mxu0 0
      %2743 = vmatpush1.bf16.msra.mxu0 %v2337
      %2744 = vmatprep.subr.bf16.mxu0 0
      %2745 = vmatpush1.bf16.msra.mxu0 %v2340
      %2746 = vmatprep.subr.bf16.mxu0 0
      %2747 = vmatpush1.bf16.msra.mxu0 %v2343
      %2748 = vmatprep.subr.bf16.mxu0 0
      %2749 = vmatpush1.bf16.msra.mxu0 %v2346
      %2750 = vmatprep.subr.bf16.mxu0 0
      %2751 = vmatpush1.bf16.msra.mxu0 %v2349
      %2752 = vmatprep.subr.bf16.mxu0 0
      %2753 = vmatpush1.bf16.msra.mxu0 %v2352
      %2754 = vmatprep.subr.bf16.mxu0 0
      %2755 = vmatpush1.bf16.msra.mxu0 %v2355
      %2756 = vmatprep.subr.bf16.mxu0 0
      %2757 = vmatpush1.bf16.msra.mxu0 %v2358
      %2758 = vmatprep.mubr.bf16.mxu0 %v2542
      %2759 = vmatmul.mubr.bf16.gmra.mrb[0].mxu0 %v2528
      %v2760 = vpop.f32.mrb[0].mxu0
      %v2761 = vadd.f32 0.0, %v2760
      %v2762 = vpop.f32.mrb[0].mxu0
      %v2763 = vpop.f32.mrb[0].mxu0
      %v2764 = vpop.f32.mrb[0].mxu0
      %2765 = vdwg.mxu0
      %2766 = vmatprep.subr.bf16.mxu0 0
      %2767 = vmatpush1.bf16.msra.mxu0 %v2361
      %2768 = vmatprep.subr.bf16.mxu0 0
      %2769 = vmatpush1.bf16.msra.mxu0 %v2364
      %2770 = vmatprep.subr.bf16.mxu0 0
      %2771 = vmatpush1.bf16.msra.mxu0 %v2367
      %2772 = vmatprep.subr.bf16.mxu0 0
      %2773 = vmatpush1.bf16.msra.mxu0 %v2370
      %2774 = vmatprep.subr.bf16.mxu0 0
      %2775 = vmatpush1.bf16.msra.mxu0 %v2373
      %2776 = vmatprep.subr.bf16.mxu0 0
      %2777 = vmatpush1.bf16.msra.mxu0 %v2376
      %2778 = vmatprep.subr.bf16.mxu0 0
      %2779 = vmatpush1.bf16.msra.mxu0 %v2379
      %2780 = vmatprep.subr.bf16.mxu0 0
      %2781 = vmatpush1.bf16.msra.mxu0 %v2382
      %2782 = vmatprep.subr.bf16.mxu0 0
      %2783 = vmatpush1.bf16.msra.mxu0 %v2385
      %2784 = vmatprep.subr.bf16.mxu0 0
      %2785 = vmatpush1.bf16.msra.mxu0 %v2388
      %2786 = vmatprep.subr.bf16.mxu0 0
      %2787 = vmatpush1.bf16.msra.mxu0 %v2391
      %2788 = vmatprep.subr.bf16.mxu0 0
      %2789 = vmatpush1.bf16.msra.mxu0 %v2394
      %2790 = vmatprep.subr.bf16.mxu0 0
      %2791 = vmatpush1.bf16.msra.mxu0 %v2397
      %2792 = vmatprep.subr.bf16.mxu0 0
      %2793 = vmatpush1.bf16.msra.mxu0 %v2400
      %2794 = vmatprep.subr.bf16.mxu0 0
      %2795 = vmatpush1.bf16.msra.mxu0 %v2403
      %2796 = vmatprep.subr.bf16.mxu0 0
      %2797 = vmatpush1.bf16.msra.mxu0 %v2406
      %2798 = vmatprep.mubr.bf16.mxu0 %v2552
      %2799 = vmatmul.mubr.bf16.gmra.mrb[0].mxu0 %v2550
      %v2800 = vpop.f32.mrb[0].mxu0
      %v2801 = vadd.f32 %v2761, %v2800
      %v2802 = vpop.f32.mrb[0].mxu0
      %v2803 = vpop.f32.mrb[0].mxu0
      %v2804 = vpop.f32.mrb[0].mxu0
      %2805 = vdwg.mxu0
      %2806 = vmatprep.subr.bf16.mxu0 0
      %2807 = vmatpush1.bf16.msra.mxu0 %v2409
      %2808 = vmatprep.subr.bf16.mxu0 0
      %2809 = vmatpush1.bf16.msra.mxu0 %v2412
      %2810 = vmatprep.subr.bf16.mxu0 0
      %2811 = vmatpush1.bf16.msra.mxu0 %v2415
      %2812 = vmatprep.subr.bf16.mxu0 0
      %2813 = vmatpush1.bf16.msra.mxu0 %v2418
      %2814 = vmatprep.subr.bf16.mxu0 0
      %2815 = vmatpush1.bf16.msra.mxu0 %v2421
      %2816 = vmatprep.subr.bf16.mxu0 0
      %2817 = vmatpush1.bf16.msra.mxu0 %v2424
      %2818 = vmatprep.subr.bf16.mxu0 0
      %2819 = vmatpush1.bf16.msra.mxu0 %v2427
      %2820 = vmatprep.subr.bf16.mxu0 0
      %2821 = vmatpush1.bf16.msra.mxu0 %v2430
      %2822 = vmatprep.subr.bf16.mxu0 0
      %2823 = vmatpush1.bf16.msra.mxu0 %v2433
      %2824 = vmatprep.subr.bf16.mxu0 0
      %2825 = vmatpush1.bf16.msra.mxu0 %v2436
      %2826 = vmatprep.subr.bf16.mxu0 0
      %2827 = vmatpush1.bf16.msra.mxu0 %v2439
      %2828 = vmatprep.subr.bf16.mxu0 0
      %2829 = vmatpush1.bf16.msra.mxu0 %v2442
      %2830 = vmatprep.subr.bf16.mxu0 0
      %2831 = vmatpush1.bf16.msra.mxu0 %v2445
      %2832 = vmatprep.subr.bf16.mxu0 0
      %2833 = vmatpush1.bf16.msra.mxu0 %v2448
      %2834 = vmatprep.subr.bf16.mxu0 0
      %2835 = vmatpush1.bf16.msra.mxu0 %v2451
      %2836 = vmatprep.subr.bf16.mxu0 0
      %2837 = vmatpush1.bf16.msra.mxu0 %v2454
      %2838 = vmatprep.mubr.bf16.mxu0 %v2549
      %2839 = vmatmul.mubr.bf16.gmra.mrb[0].mxu0 %v2535
      %v2840 = vpop.f32.mrb[0].mxu0
      %v2841 = vadd.f32 %v2801, %v2840
      %v2842 = vpop.f32.mrb[0].mxu0
      %v2843 = vpop.f32.mrb[0].mxu0
      %v2844 = vpop.f32.mrb[0].mxu0
      %2845 = vdwg.mxu0
      %2846 = vmatprep.subr.bf16.mxu0 0
      %2847 = vmatpush1.bf16.msra.mxu0 %v2457
      %2848 = vmatprep.subr.bf16.mxu0 0
      %2849 = vmatpush1.bf16.msra.mxu0 %v2460
      %2850 = vmatprep.subr.bf16.mxu0 0
      %2851 = vmatpush1.bf16.msra.mxu0 %v2463
      %2852 = vmatprep.subr.bf16.mxu0 0
      %2853 = vmatpush1.bf16.msra.mxu0 %v2466
      %2854 = vmatprep.subr.bf16.mxu0 0
      %2855 = vmatpush1.bf16.msra.mxu0 %v2469
      %2856 = vmatprep.subr.bf16.mxu0 0
      %2857 = vmatpush1.bf16.msra.mxu0 %v2472
      %2858 = vmatprep.subr.bf16.mxu0 0
      %2859 = vmatpush1.bf16.msra.mxu0 %v2475
      %2860 = vmatprep.subr.bf16.mxu0 0
      %2861 = vmatpush1.bf16.msra.mxu0 %v2478
      %2862 = vmatprep.subr.bf16.mxu0 0
      %2863 = vmatpush1.bf16.msra.mxu0 %v2481
      %2864 = vmatprep.subr.bf16.mxu0 0
      %2865 = vmatpush1.bf16.msra.mxu0 %v2484
      %2866 = vmatprep.subr.bf16.mxu0 0
      %2867 = vmatpush1.bf16.msra.mxu0 %v2487
      %2868 = vmatprep.subr.bf16.mxu0 0
      %2869 = vmatpush1.bf16.msra.mxu0 %v2490
      %2870 = vmatprep.subr.bf16.mxu0 0
      %2871 = vmatpush1.bf16.msra.mxu0 %v2493
      %2872 = vmatprep.subr.bf16.mxu0 0
      %2873 = vmatpush1.bf16.msra.mxu0 %v2496
      %2874 = vmatprep.subr.bf16.mxu0 0
      %2875 = vmatpush1.bf16.msra.mxu0 %v2499
      %2876 = vmatprep.subr.bf16.mxu0 0
      %2877 = vmatpush1.bf16.msra.mxu0 %v2502
      %2878 = vmatprep.mubr.bf16.mxu0 %v2553
      %2879 = vmatmul.mubr.bf16.gmra.mrb[0].mxu0 %v2551
      %v2880 = vpop.f32.mrb[0].mxu0
      %v2881 = vadd.f32 %v2841, %v2880
      %v2882 = vpop.f32.mrb[0].mxu0
      %v2883 = vpop.f32.mrb[0].mxu0
      %v2884 = vpop.f32.mrb[0].mxu0
      %2885 = vdwg.mxu0
      %v2886 = vld [vmem:[%s229] sm:$0x7]
      %v2890 = vcombine.low %v2720, %v2722
      %v2892 = vunpack.c.l.s4 1966171168
      %v2893 = vunpack.c.0.s8 %v2892
      %v2894 = vlaneseq
      %v2895 = vshrl.u32 %v2894, 7
      %v2896 = vsub.s32 %v2893, %v2895
      %v2897 = vrot.slane %v2890, %v2896
      %v2899 = vunpack.c.l.s4 1966171168
      %v2900 = vunpack.c.0.s8 %v2899
      %v2901 = vlaneseq
      %v2902 = vshrl.u32 %v2901, 7
      %v2903 = vsub.s32 %v2900, %v2902
      %v2904 = vrot.slane %v2881, %v2903
      %v2905 = vcombine.low %v2897, %v2904
      %v2907 = vunpack.c.l.s4 1966171168
      %v2908 = vunpack.c.0.s8 %v2907
      %v2909 = vlaneseq
      %v2910 = vshrl.u32 %v2909, 7
      %v2911 = vsub.s32 %v2908, %v2910
      %v2912 = vrot.slane %v2905, %v2911
      %v2914 = vadd.f32 %v2886, %v2912
      %v2915 = vlaneseq
      %vm2916 = vcmp.ge.s32.totalorder %v2915, 0
      %vm2917 = vcmp.lt.s32.totalorder %v2915, 384
      %vm2918 = vmand %vm2916, %vm2917
      %2919 = vst.msk [vmem:[%s229] sm:$0x7] %vm2918, %v2914
      %p2920 = scmp.lt.s32.totalorder %s18, 0
      %s2921 = scalar_select %p2920, %s18, 0
      %s2922 = smul.addr %s2921, 3
      %s2923 = scalar_lea.vmem %s3, %s2922
      // Predicated region
      $region37: #{dynamical_model_forward.1} parent=31 // pred_check
        %p2924 = pneg %p125
      $region38: #{dynamical_model_forward.1} parent=31 // pred_check_branch
        %2926 = sbr.rel (%p2924) target = $region40
      $region39: #{dynamical_model_forward.1} parent=31 // pred_region
        _
      $region40: #{dynamical_model_forward.1} parent=31 // pred_fallthru
        _
      // Predicated region
      $region41: #{dynamical_model_forward.1} parent=31 // pred_check
        %p2927 = pneg %p125
      $region42: #{dynamical_model_forward.1} parent=31 // pred_check_branch
        %2929 = sbr.rel (%p2927) target = $region44
      $region43: #{dynamical_model_forward.1} parent=31 // pred_region
        %p2930 = scmp.lt.s32.totalorder %s18, 0
        %s2931 = scalar_select %p2930, %s18, 0
        %s2932 = smul.addr %s2931, 3
        %s2933 = scalar_lea.vmem %s3, %s2932
      $region44: #{dynamical_model_forward.1} parent=31 // pred_fallthru
        _
    $region32: #{dynamical_model_forward.1} parent=5 // pred_fallthru
      _
    %p2934 = scmp.le.s32.totalorder 2, %s9
    // Predicated region
    $region45: #{dynamical_model_forward.1} parent=5 // pred_check
      %p2935 = pneg %p2934
    $region46: #{dynamical_model_forward.1} parent=5 // pred_check_branch
      %2937 = sbr.rel (%p2935) target = $region48
    $region47: #{dynamical_model_forward.1} parent=5 // pred_region
      %s2938 = ssub.s32 %s9, 2
    $region48: #{dynamical_model_forward.1} parent=5 // pred_fallthru
      _
  $region6: #{dynamical_model_forward.1} parent=0 // loop_footer
    %s13 = sadd.s32 1, %s9
  $region7: #{dynamical_model_forward.1} parent=0 // loop_footer_branch
    %8 = sbr.rel target = $region3
  $region8: #{dynamical_model_forward.1} parent=0 // loop_exit
    _

</llo_original>
